<compile_context>
chip_gen: v6e
topology: v6e:2x2x1
jax: 0.10.0
libtpu: 0.0.40
codegen_flags: <defaults>
</compile_context>

<pallas_src>
import jax
import jax.numpy as jnp
from jax.experimental import pallas as pl
from jax.experimental.pallas import tpu as pltpu

# ----------------------------- config ---------------------------------------
BATCH = 2
SEQ = 8
HIDDEN = 32
NUM_HEADS = 2
HEAD_DIM = HIDDEN // NUM_HEADS
INTERMEDIATE = 64
NUM_LAYERS = 2
VOCAB = 64
MAX_POS = 16
TYPE_VOCAB = 2
LN_EPS = 1e-12


# --------------------------- kernel helpers ---------------------------------
def _layernorm(x, g, b, eps=LN_EPS):
    # f32 math (v5e has no bf16 VPU path); g/b broadcast over rows.
    mu = jnp.mean(x, axis=-1, keepdims=True)
    var = jnp.mean(jnp.square(x - mu), axis=-1, keepdims=True)
    return (x - mu) * jax.lax.rsqrt(var + eps) * g + b


# ----------------------------- Pallas kernel ---------------------------------
def bert_layer_kernel(emb_ref, mask_ref, emb_g_ref, emb_b_ref,
                      wq_ref, wk_ref, wv_ref, bq_ref, bk_ref, bv_ref,
                      wo_ref, bo_ref, ln1g_ref, ln1b_ref,
                      w1_ref, b1_ref, w2_ref, b2_ref,
                      ln2g_ref, ln2b_ref,
                      o_ref, h_scratch):
    """One grid step == one transformer layer; hidden state carried in VMEM scratch."""
    layer = pl.program_id(0)
    B, S, H = emb_ref.shape

    # ---- layer 0: embedding LayerNorm seeds the residual stream -------------
    @pl.when(layer == 0)
    def _():
        x = emb_ref[...].astype(jnp.float32).reshape(B * S, H)
        h_scratch[...] = _layernorm(x, emb_g_ref[...], emb_b_ref[...])

    h = h_scratch[...]                       # (B*S, H) f32 residual stream
    h_bf = h.astype(jnp.bfloat16)            # bf16 matmul operand

    # Additive attention mask broadcast over query rows: (B, 1, S).
    add_mask = mask_ref[...][:, None, :]

    # ---- multi-head self-attention ------------------------------------------
    # Per-head weights live on leading axes of the weight refs, so all slicing
    # is a zero-cost ref view (no lane-axis relayouts, no concat of heads).
    attn = jnp.zeros((B * S, H), jnp.float32)
    for hd in range(NUM_HEADS):              # static unroll; tiny at these dims
        # Q weights already include the 1/sqrt(HEAD_DIM) scale (folded at init).
        q = (jnp.dot(h_bf, wq_ref[0, hd], preferred_element_type=jnp.float32)
             + bq_ref[0, hd]).reshape(B, S, HEAD_DIM)
        k = (jnp.dot(h_bf, wk_ref[0, hd], preferred_element_type=jnp.float32)
             + bk_ref[0, hd]).reshape(B, S, HEAD_DIM)
        v = (jnp.dot(h_bf, wv_ref[0, hd], preferred_element_type=jnp.float32)
             + bv_ref[0, hd]).reshape(B, S, HEAD_DIM)

        s = jnp.einsum('bqd,bkd->bqk',
                       q.astype(jnp.bfloat16), k.astype(jnp.bfloat16),
                       preferred_element_type=jnp.float32)
        s = s + add_mask
        s = s - jnp.max(s, axis=-1, keepdims=True)
        p = jnp.exp(s)                                      # f32 softmax
        p = p / jnp.sum(p, axis=-1, keepdims=True)          # exact divide

        ctx = jnp.einsum('bqk,bkd->bqd',
                         p.astype(jnp.bfloat16), v.astype(jnp.bfloat16),
                         preferred_element_type=jnp.float32)
        # Fold this head straight through its slab of the output projection and
        # accumulate — replaces the head concat entirely.
        attn = attn + jnp.dot(ctx.reshape(B * S, HEAD_DIM).astype(jnp.bfloat16),
                              wo_ref[0, hd], preferred_element_type=jnp.float32)
    attn = attn + bo_ref[0]

    h1 = _layernorm(h + attn, ln1g_ref[0], ln1b_ref[0])

    # ---- feed-forward --------------------------------------------------------
    ff = jnp.dot(h1.astype(jnp.bfloat16), w1_ref[0],
                 preferred_element_type=jnp.float32) + b1_ref[0]
    # TODO(synk): HuggingFace BERT uses exact erf GELU; tanh approximation used
    # here (erf has no guaranteed Mosaic lowering).
    ff = jax.nn.gelu(ff, approximate=True)
    ff = jnp.dot(ff.astype(jnp.bfloat16), w2_ref[0],
                 preferred_element_type=jnp.float32) + b2_ref[0]

    h_new = _layernorm(h1 + ff, ln2g_ref[0], ln2b_ref[0])
    h_scratch[...] = h_new

    # ---- only the CLS row goes back to HBM, once, after the last layer ------
    @pl.when(layer == pl.num_programs(0) - 1)
    def _():
        o_ref[...] = h_new.reshape(B, S, H)[:, 0, :].astype(o_ref.dtype)


# ------------------------------ wrapper --------------------------------------
def bert_forward_fused(emb, add_mask, p):
    B, S, H = emb.shape

    def shared(shape):
        # Same block every layer step: loaded once, stays resident in VMEM.
        return pl.BlockSpec(shape, lambda l, _n=len(shape): (0,) * _n)

    def per_layer(tail_shape):
        # Leading layer axis is selected by the grid index -> Pallas
        # double-buffers the next layer's weights behind current compute.
        return pl.BlockSpec((1,) + tail_shape,
                            lambda l, _n=len(tail_shape): (l,) + (0,) * _n)

    in_specs = [
        shared((B, S, H)),                        # emb
        shared((B, S)),                           # additive mask
        shared((1, H)),                           # emb_ln_g
        shared((1, H)),                           # emb_ln_b
        per_layer((NUM_HEADS, H, HEAD_DIM)),      # wq
        per_layer((NUM_HEADS, H, HEAD_DIM)),      # wk
        per_layer((NUM_HEADS, H, HEAD_DIM)),      # wv
        per_layer((NUM_HEADS, 1, HEAD_DIM)),      # bq
        per_layer((NUM_HEADS, 1, HEAD_DIM)),      # bk
        per_layer((NUM_HEADS, 1, HEAD_DIM)),      # bv
        per_layer((NUM_HEADS, HEAD_DIM, H)),      # wo
        per_layer((1, H)),                        # bo
        per_layer((1, H)),                        # ln1_g
        per_layer((1, H)),                        # ln1_b
        per_layer((H, INTERMEDIATE)),             # w1
        per_layer((1, INTERMEDIATE)),             # b1
        per_layer((INTERMEDIATE, H)),             # w2
        per_layer((1, H)),                        # b2
        per_layer((1, H)),                        # ln2_g
        per_layer((1, H)),                        # ln2_b
    ]
    args = [emb, add_mask, p["emb_ln_g"], p["emb_ln_b"],
            p["wq"], p["wk"], p["wv"], p["bq"], p["bk"], p["bv"],
            p["wo"], p["bo"], p["ln1_g"], p["ln1_b"],
            p["w1"], p["b1"], p["w2"], p["b2"], p["ln2_g"], p["ln2_b"]]

    return pl.pallas_call(
        bert_layer_kernel,
        out_shape=jax.ShapeDtypeStruct((B, H), jnp.float32),
        grid_spec=pltpu.PrefetchScalarGridSpec(
            num_scalar_prefetch=0,
            grid=(NUM_LAYERS,),
            in_specs=in_specs,
            out_specs=pl.BlockSpec((B, H), lambda l: (0, 0)),
            scratch_shapes=[pltpu.VMEM((B * S, H), jnp.float32)],
        ),
        compiler_params=pltpu.CompilerParams(
            dimension_semantics=("arbitrary",)),   # layer axis is sequential
    )(*args)


# ---------------------- deterministic parameter init ------------------------
def init_params(key):
    std = 0.02
    scale = 1.0 / (HEAD_DIM ** 0.5)
    ks = jax.random.split(key, 3 + NUM_LAYERS * 6)
    params = {
        "word_emb": jax.random.normal(ks[0], (VOCAB, HIDDEN), jnp.float32) * std,
        "pos_emb": jax.random.normal(ks[1], (MAX_POS, HIDDEN), jnp.float32) * std,
        "type_emb": jax.random.normal(ks[2], (TYPE_VOCAB, HIDDEN), jnp.float32) * std,
        "emb_ln_g": jnp.ones((1, HIDDEN), jnp.float32),
        "emb_ln_b": jnp.zeros((1, HIDDEN), jnp.float32),
    }
    wq, wk, wv, wo, w1, w2 = [], [], [], [], [], []
    idx = 3
    for _ in range(NUM_LAYERS):
        wq.append(jax.random.normal(ks[idx + 0], (NUM_HEADS, HIDDEN, HEAD_DIM), jnp.float32) * std)
        wk.append(jax.random.normal(ks[idx + 1], (NUM_HEADS, HIDDEN, HEAD_DIM), jnp.float32) * std)
        wv.append(jax.random.normal(ks[idx + 2], (NUM_HEADS, HIDDEN, HEAD_DIM), jnp.float32) * std)
        wo.append(jax.random.normal(ks[idx + 3], (NUM_HEADS, HEAD_DIM, HIDDEN), jnp.float32) * std)
        w1.append(jax.random.normal(ks[idx + 4], (HIDDEN, INTERMEDIATE), jnp.float32) * std)
        w2.append(jax.random.normal(ks[idx + 5], (INTERMEDIATE, HIDDEN), jnp.float32) * std)
        idx += 6

    # Fold the 1/sqrt(HEAD_DIM) attention scale into the Q projection (one-time).
    wq = jnp.stack(wq) * scale

    params.update({
        # Matmul weights stored in bf16 (MXU-native); biases / LN params in f32.
        "wq": wq.astype(jnp.bfloat16),
        "wk": jnp.stack(wk).astype(jnp.bfloat16),
        "wv": jnp.stack(wv).astype(jnp.bfloat16),
        "bq": jnp.zeros((NUM_LAYERS, NUM_HEADS, 1, HEAD_DIM), jnp.float32),  # scale folded (zeros)
        "bk": jnp.zeros((NUM_LAYERS, NUM_HEADS, 1, HEAD_DIM), jnp.float32),
        "bv": jnp.zeros((NUM_LAYERS, NUM_HEADS, 1, HEAD_DIM), jnp.float32),
        "wo": jnp.stack(wo).astype(jnp.bfloat16),
        "bo": jnp.zeros((NUM_LAYERS, 1, HIDDEN), jnp.float32),
        "ln1_g": jnp.ones((NUM_LAYERS, 1, HIDDEN), jnp.float32),
        "ln1_b": jnp.zeros((NUM_LAYERS, 1, HIDDEN), jnp.float32),
        "w1": jnp.stack(w1).astype(jnp.bfloat16),
        "b1": jnp.zeros((NUM_LAYERS, 1, INTERMEDIATE), jnp.float32),
        "w2": jnp.stack(w2).astype(jnp.bfloat16),
        "b2": jnp.zeros((NUM_LAYERS, 1, HIDDEN), jnp.float32),
        "ln2_g": jnp.ones((NUM_LAYERS, 1, HIDDEN), jnp.float32),
        "ln2_b": jnp.zeros((NUM_LAYERS, 1, HIDDEN), jnp.float32),
    })
    return params


# ----------------------------- forward pass ----------------------------------
@jax.jit
def bio_clinical_bert_ft_forward(params, input_ids, attention_mask):
    """Equivalent of BioClinicalBERT_FT.forward: returns CLS embedding (B, H)."""
    B, S = input_ids.shape
    # --- embeddings (gathers stay in plain JAX) ---
    # TODO(synk): token_type_ids hard-coded to 0 (single-segment inputs assumed).
    positions = jnp.arange(S)
    emb = (params["word_emb"][input_ids]
           + params["pos_emb"][positions][None, :, :]
           + params["type_emb"][0][None, None, :]).astype(jnp.float32)

    # --- additive attention mask: (1 - mask) * -10000, shape (B, S) ---
    add_mask = (1.0 - attention_mask.astype(jnp.float32)) * -10000.0

    # --- fused kernel: emb-LN + all encoder layers (grid) + CLS slice ---
    return bert_forward_fused(emb, add_mask, params)


# --------------------------------- main --------------------------------------
if __name__ == "__main__":
    key = jax.random.PRNGKey(0)
    pkey, ikey = jax.random.split(key)
    params = init_params(pkey)

    input_ids = jax.random.randint(ikey, (BATCH, SEQ), 0, VOCAB, dtype=jnp.int32)
    attention_mask = jnp.ones((BATCH, SEQ), jnp.int32)
    # zero out the tail of the second sequence to exercise masking
    attention_mask = attention_mask.at[1, SEQ - 3:].set(0)

    cls_embedding = bio_clinical_bert_ft_forward(params, input_ids, attention_mask)
    cls_embedding = jax.block_until_ready(cls_embedding)

    assert cls_embedding.shape == (BATCH, HIDDEN)
    assert bool(jnp.all(jnp.isfinite(cls_embedding)))
    print("KERNEL_OK")
</pallas_src>

<mosaic_0001>
module attributes {stable_mosaic.version = 11 : i64} {
  func.func @bert_layer_kernel(%arg0: i32, %arg1: memref<2x8x32xf32, #tpu.memory_space<vmem>>, %arg2: memref<2x8xf32, #tpu.memory_space<vmem>>, %arg3: memref<1x32xf32, #tpu.memory_space<vmem>>, %arg4: memref<1x32xf32, #tpu.memory_space<vmem>>, %arg5: memref<1x2x32x16xbf16, #tpu.memory_space<vmem>>, %arg6: memref<1x2x32x16xbf16, #tpu.memory_space<vmem>>, %arg7: memref<1x2x32x16xbf16, #tpu.memory_space<vmem>>, %arg8: memref<1x2x1x16xf32, #tpu.memory_space<vmem>>, %arg9: memref<1x2x1x16xf32, #tpu.memory_space<vmem>>, %arg10: memref<1x2x1x16xf32, #tpu.memory_space<vmem>>, %arg11: memref<1x2x16x32xbf16, #tpu.memory_space<vmem>>, %arg12: memref<1x1x32xf32, #tpu.memory_space<vmem>>, %arg13: memref<1x1x32xf32, #tpu.memory_space<vmem>>, %arg14: memref<1x1x32xf32, #tpu.memory_space<vmem>>, %arg15: memref<1x32x64xbf16, #tpu.memory_space<vmem>>, %arg16: memref<1x1x64xf32, #tpu.memory_space<vmem>>, %arg17: memref<1x64x32xbf16, #tpu.memory_space<vmem>>, %arg18: memref<1x1x32xf32, #tpu.memory_space<vmem>>, %arg19: memref<1x1x32xf32, #tpu.memory_space<vmem>>, %arg20: memref<1x1x32xf32, #tpu.memory_space<vmem>>, %arg21: memref<2x32xf32, #tpu.memory_space<vmem>>, %arg22: memref<16x32xf32, #tpu.memory_space<vmem>>) attributes {dimension_semantics = [#tpu.dimension_semantics<arbitrary>], iteration_bounds = array<i64: 2>, scalar_prefetch = 0 : i64, scratch_operands = 1 : i64, tpu.core_type = #tpu.core_type<tc>, window_params = [{pipeline_mode = #tpu.pipeline_mode<synchronous>, transform_indices = @transform_0, window_bounds = array<i64: 2, 8, 32>}, {pipeline_mode = #tpu.pipeline_mode<synchronous>, transform_indices = @transform_1, window_bounds = array<i64: 2, 8>}, {pipeline_mode = #tpu.pipeline_mode<synchronous>, transform_indices = @transform_2, window_bounds = array<i64: 1, 32>}, {pipeline_mode = #tpu.pipeline_mode<synchronous>, transform_indices = @transform_3, window_bounds = array<i64: 1, 32>}, {transform_indices = @transform_4, window_bounds = array<i64: 1, 2, 32, 16>}, {transform_indices = @transform_5, window_bounds = array<i64: 1, 2, 32, 16>}, {transform_indices = @transform_6, window_bounds = array<i64: 1, 2, 32, 16>}, {transform_indices = @transform_7, window_bounds = array<i64: 1, 2, 1, 16>}, {transform_indices = @transform_8, window_bounds = array<i64: 1, 2, 1, 16>}, {transform_indices = @transform_9, window_bounds = array<i64: 1, 2, 1, 16>}, {transform_indices = @transform_10, window_bounds = array<i64: 1, 2, 16, 32>}, {transform_indices = @transform_11, window_bounds = array<i64: 1, 1, 32>}, {transform_indices = @transform_12, window_bounds = array<i64: 1, 1, 32>}, {transform_indices = @transform_13, window_bounds = array<i64: 1, 1, 32>}, {transform_indices = @transform_14, window_bounds = array<i64: 1, 32, 64>}, {transform_indices = @transform_15, window_bounds = array<i64: 1, 1, 64>}, {transform_indices = @transform_16, window_bounds = array<i64: 1, 64, 32>}, {transform_indices = @transform_17, window_bounds = array<i64: 1, 1, 32>}, {transform_indices = @transform_18, window_bounds = array<i64: 1, 1, 32>}, {transform_indices = @transform_19, window_bounds = array<i64: 1, 1, 32>}, {pipeline_mode = #tpu.pipeline_mode<synchronous>, transform_indices = @transform_20, window_bounds = array<i64: 2, 32>}]} {
    %c0_i32 = arith.constant 0 : i32
    %0 = arith.cmpi eq, %arg0, %c0_i32 : i32
    %1 = arith.extui %0 : i1 to i32
    %c0_i32_0 = arith.constant 0 : i32
    %2 = arith.cmpi ne, %1, %c0_i32_0 : i32
    scf.if %2 {
      %c0_121 = arith.constant 0 : index
      %c0_122 = arith.constant 0 : index
      %c0_123 = arith.constant 0 : index
      %193 = vector.load %arg1[%c0_121, %c0_122, %c0_123] : memref<2x8x32xf32, #tpu.memory_space<vmem>>, vector<2x8x32xf32>
      %194 = vector.shape_cast %193 : vector<2x8x32xf32> to vector<16x32xf32>
      %c0_124 = arith.constant 0 : index
      %c0_125 = arith.constant 0 : index
      %195 = vector.load %arg3[%c0_124, %c0_125] : memref<1x32xf32, #tpu.memory_space<vmem>>, vector<1x32xf32>
      %c0_126 = arith.constant 0 : index
      %c0_127 = arith.constant 0 : index
      %196 = vector.load %arg4[%c0_126, %c0_127] : memref<1x32xf32, #tpu.memory_space<vmem>>, vector<1x32xf32>
      %cst_128 = arith.constant dense<0.000000e+00> : vector<16xf32>
      %197 = vector.multi_reduction <add>, %194, %cst_128 [1] : vector<16x32xf32> to vector<16xf32>
      %198 = vector.shape_cast %197 : vector<16xf32> to vector<16x1xf32>
      %cst_129 = arith.constant 3.200000e+01 : f32
      %199 = vector.broadcast %cst_129 : f32 to vector<16x1xf32>
      %200 = arith.divf %198, %199 : vector<16x1xf32>
      %201 = vector.broadcast %200 : vector<16x1xf32> to vector<16x32xf32>
      %202 = arith.subf %194, %201 : vector<16x32xf32>
      %203 = arith.mulf %202, %202 : vector<16x32xf32>
      %cst_130 = arith.constant dense<0.000000e+00> : vector<16xf32>
      %204 = vector.multi_reduction <add>, %203, %cst_130 [1] : vector<16x32xf32> to vector<16xf32>
      %205 = vector.shape_cast %204 : vector<16xf32> to vector<16x1xf32>
      %cst_131 = arith.constant 3.200000e+01 : f32
      %206 = vector.broadcast %cst_131 : f32 to vector<16x1xf32>
      %207 = arith.divf %205, %206 : vector<16x1xf32>
      %208 = vector.broadcast %200 : vector<16x1xf32> to vector<16x32xf32>
      %209 = arith.subf %194, %208 : vector<16x32xf32>
      %cst_132 = arith.constant 9.99999996E-13 : f32
      %210 = vector.broadcast %cst_132 : f32 to vector<16x1xf32>
      %211 = arith.addf %207, %210 : vector<16x1xf32>
      %212 = math.rsqrt %211 : vector<16x1xf32>
      %213 = vector.broadcast %212 : vector<16x1xf32> to vector<16x32xf32>
      %214 = arith.mulf %209, %213 : vector<16x32xf32>
      %215 = vector.broadcast %195 : vector<1x32xf32> to vector<16x32xf32>
      %216 = arith.mulf %214, %215 : vector<16x32xf32>
      %217 = vector.broadcast %196 : vector<1x32xf32> to vector<16x32xf32>
      %218 = arith.addf %216, %217 : vector<16x32xf32>
      %c0_133 = arith.constant 0 : index
      %c0_134 = arith.constant 0 : index
      %219 = vector.load %arg22[%c0_133, %c0_134] : memref<16x32xf32, #tpu.memory_space<vmem>>, vector<16x32xf32>
      tpu.vector_store %arg22[%c0_133, %c0_134], %218 {strides = array<i32>} : memref<16x32xf32, #tpu.memory_space<vmem>>, vector<16x32xf32>,
    } else {
    }
    %c0 = arith.constant 0 : index
    %c0_1 = arith.constant 0 : index
    %3 = vector.load %arg22[%c0, %c0_1] : memref<16x32xf32, #tpu.memory_space<vmem>>, vector<16x32xf32>
    %4 = arith.truncf %3 : vector<16x32xf32> to vector<16x32xbf16>
    %c0_2 = arith.constant 0 : index
    %c0_3 = arith.constant 0 : index
    %5 = vector.load %arg2[%c0_2, %c0_3] : memref<2x8xf32, #tpu.memory_space<vmem>>, vector<2x8xf32>
    %6 = vector.shape_cast %5 : vector<2x8xf32> to vector<2x1x8xf32>
    %cst = arith.constant 0.000000e+00 : f32
    %7 = vector.broadcast %cst : f32 to vector<16x32xf32>
    %c0_4 = arith.constant 0 : index
    %c0_5 = arith.constant 0 : index
    %c0_6 = arith.constant 0 : index
    %c0_7 = arith.constant 0 : index
    %8 = vector.load %arg5[%c0_4, %c0_5, %c0_6, %c0_7] : memref<1x2x32x16xbf16, #tpu.memory_space<vmem>>, vector<1x1x32x16xbf16>
    %9 = vector.shape_cast %8 : vector<1x1x32x16xbf16> to vector<32x16xbf16>
    %cst_8 = arith.constant dense<0.000000e+00> : vector<16x16xf32>
    %10 = tpu.matmul %4, %9, %cst_8 {dimension_numbers = #tpu.dot_dimension_numbers<[1], [0], [0], [1], [0, 0, 1, 1], [], []>} : vector<16x32xbf16>, vector<32x16xbf16>, vector<16x16xf32> -> vector<16x16xf32>
    %c0_9 = arith.constant 0 : index
    %c0_10 = arith.constant 0 : index
    %c0_11 = arith.constant 0 : index
    %c0_12 = arith.constant 0 : index
    %11 = vector.load %arg8[%c0_9, %c0_10, %c0_11, %c0_12] : memref<1x2x1x16xf32, #tpu.memory_space<vmem>>, vector<1x1x1x16xf32>
    %12 = vector.shape_cast %11 : vector<1x1x1x16xf32> to vector<1x16xf32>
    %13 = vector.broadcast %12 : vector<1x16xf32> to vector<16x16xf32>
    %14 = arith.addf %10, %13 : vector<16x16xf32>
    %15 = vector.shape_cast %14 : vector<16x16xf32> to vector<2x8x16xf32>
    %c0_13 = arith.constant 0 : index
    %c0_14 = arith.constant 0 : index
    %c0_15 = arith.constant 0 : index
    %c0_16 = arith.constant 0 : index
    %16 = vector.load %arg6[%c0_13, %c0_14, %c0_15, %c0_16] : memref<1x2x32x16xbf16, #tpu.memory_space<vmem>>, vector<1x1x32x16xbf16>
    %17 = vector.shape_cast %16 : vector<1x1x32x16xbf16> to vector<32x16xbf16>
    %cst_17 = arith.constant dense<0.000000e+00> : vector<16x16xf32>
    %18 = tpu.matmul %4, %17, %cst_17 {dimension_numbers = #tpu.dot_dimension_numbers<[1], [0], [0], [1], [0, 0, 1, 1], [], []>} : vector<16x32xbf16>, vector<32x16xbf16>, vector<16x16xf32> -> vector<16x16xf32>
    %c0_18 = arith.constant 0 : index
    %c0_19 = arith.constant 0 : index
    %c0_20 = arith.constant 0 : index
    %c0_21 = arith.constant 0 : index
    %19 = vector.load %arg9[%c0_18, %c0_19, %c0_20, %c0_21] : memref<1x2x1x16xf32, #tpu.memory_space<vmem>>, vector<1x1x1x16xf32>
    %20 = vector.shape_cast %19 : vector<1x1x1x16xf32> to vector<1x16xf32>
    %21 = vector.broadcast %20 : vector<1x16xf32> to vector<16x16xf32>
    %22 = arith.addf %18, %21 : vector<16x16xf32>
    %23 = vector.shape_cast %22 : vector<16x16xf32> to vector<2x8x16xf32>
    %c0_22 = arith.constant 0 : index
    %c0_23 = arith.constant 0 : index
    %c0_24 = arith.constant 0 : index
    %c0_25 = arith.constant 0 : index
    %24 = vector.load %arg7[%c0_22, %c0_23, %c0_24, %c0_25] : memref<1x2x32x16xbf16, #tpu.memory_space<vmem>>, vector<1x1x32x16xbf16>
    %25 = vector.shape_cast %24 : vector<1x1x32x16xbf16> to vector<32x16xbf16>
    %cst_26 = arith.constant dense<0.000000e+00> : vector<16x16xf32>
    %26 = tpu.matmul %4, %25, %cst_26 {dimension_numbers = #tpu.dot_dimension_numbers<[1], [0], [0], [1], [0, 0, 1, 1], [], []>} : vector<16x32xbf16>, vector<32x16xbf16>, vector<16x16xf32> -> vector<16x16xf32>
    %c0_27 = arith.constant 0 : index
    %c0_28 = arith.constant 0 : index
    %c0_29 = arith.constant 0 : index
    %c0_30 = arith.constant 0 : index
    %27 = vector.load %arg10[%c0_27, %c0_28, %c0_29, %c0_30] : memref<1x2x1x16xf32, #tpu.memory_space<vmem>>, vector<1x1x1x16xf32>
    %28 = vector.shape_cast %27 : vector<1x1x1x16xf32> to vector<1x16xf32>
    %29 = vector.broadcast %28 : vector<1x16xf32> to vector<16x16xf32>
    %30 = arith.addf %26, %29 : vector<16x16xf32>
    %31 = vector.shape_cast %30 : vector<16x16xf32> to vector<2x8x16xf32>
    %32 = arith.truncf %15 : vector<2x8x16xf32> to vector<2x8x16xbf16>
    %33 = arith.truncf %23 : vector<2x8x16xf32> to vector<2x8x16xbf16>
    "tpu.trace_start"() <{level = 10 : i32, message = "bqd,bkd->bqk"}> : () -> ()
    %cst_31 = arith.constant dense<0.000000e+00> : vector<2x8x8xf32>
    %34 = tpu.matmul %32, %33, %cst_31 {dimension_numbers = #tpu.dot_dimension_numbers<[2], [2], [1], [1], [0, 0, 0, 1, 1, 1], [0], [0]>} : vector<2x8x16xbf16>, vector<2x8x16xbf16>, vector<2x8x8xf32> -> vector<2x8x8xf32>
    "tpu.trace_stop"() : () -> ()
    %35 = vector.broadcast %6 : vector<2x1x8xf32> to vector<2x8x8xf32>
    %36 = arith.addf %34, %35 : vector<2x8x8xf32>
    %cst_32 = arith.constant dense<0xFF800000> : vector<2x8xf32>
    %37 = vector.multi_reduction <maximumf>, %36, %cst_32 [2] : vector<2x8x8xf32> to vector<2x8xf32>
    %38 = vector.shape_cast %37 : vector<2x8xf32> to vector<2x8x1xf32>
    %39 = vector.broadcast %38 : vector<2x8x1xf32> to vector<2x8x8xf32>
    %40 = arith.subf %36, %39 : vector<2x8x8xf32>
    %41 = math.exp %40 : vector<2x8x8xf32>
    %cst_33 = arith.constant dense<0.000000e+00> : vector<2x8xf32>
    %42 = vector.multi_reduction <add>, %41, %cst_33 [2] : vector<2x8x8xf32> to vector<2x8xf32>
    %43 = vector.shape_cast %42 : vector<2x8xf32> to vector<2x8x1xf32>
    %44 = vector.broadcast %43 : vector<2x8x1xf32> to vector<2x8x8xf32>
    %45 = arith.divf %41, %44 : vector<2x8x8xf32>
    %46 = arith.truncf %45 : vector<2x8x8xf32> to vector<2x8x8xbf16>
    %47 = arith.truncf %31 : vector<2x8x16xf32> to vector<2x8x16xbf16>
    "tpu.trace_start"() <{level = 10 : i32, message = "bqk,bkd->bqd"}> : () -> ()
    %cst_34 = arith.constant dense<0.000000e+00> : vector<2x8x16xf32>
    %48 = tpu.matmul %46, %47, %cst_34 {dimension_numbers = #tpu.dot_dimension_numbers<[2], [1], [1], [2], [0, 0, 0, 1, 1, 2], [0], [0]>} : vector<2x8x8xbf16>, vector<2x8x16xbf16>, vector<2x8x16xf32> -> vector<2x8x16xf32>
    "tpu.trace_stop"() : () -> ()
    %49 = vector.shape_cast %48 : vector<2x8x16xf32> to vector<16x16xf32>
    %50 = arith.truncf %49 : vector<16x16xf32> to vector<16x16xbf16>
    %c0_35 = arith.constant 0 : index
    %c0_36 = arith.constant 0 : index
    %c0_37 = arith.constant 0 : index
    %c0_38 = arith.constant 0 : index
    %51 = vector.load %arg11[%c0_35, %c0_36, %c0_37, %c0_38] : memref<1x2x16x32xbf16, #tpu.memory_space<vmem>>, vector<1x1x16x32xbf16>
    %52 = vector.shape_cast %51 : vector<1x1x16x32xbf16> to vector<16x32xbf16>
    %cst_39 = arith.constant dense<0.000000e+00> : vector<16x32xf32>
    %53 = tpu.matmul %50, %52, %cst_39 {dimension_numbers = #tpu.dot_dimension_numbers<[1], [0], [0], [1], [0, 0, 1, 1], [], []>} : vector<16x16xbf16>, vector<16x32xbf16>, vector<16x32xf32> -> vector<16x32xf32>
    %54 = arith.addf %7, %53 : vector<16x32xf32>
    %c0_40 = arith.constant 0 : index
    %c1 = arith.constant 1 : index
    %c0_41 = arith.constant 0 : index
    %c0_42 = arith.constant 0 : index
    %55 = vector.load %arg5[%c0_40, %c1, %c0_41, %c0_42] : memref<1x2x32x16xbf16, #tpu.memory_space<vmem>>, vector<1x1x32x16xbf16>
    %56 = vector.shape_cast %55 : vector<1x1x32x16xbf16> to vector<32x16xbf16>
    %cst_43 = arith.constant dense<0.000000e+00> : vector<16x16xf32>
    %57 = tpu.matmul %4, %56, %cst_43 {dimension_numbers = #tpu.dot_dimension_numbers<[1], [0], [0], [1], [0, 0, 1, 1], [], []>} : vector<16x32xbf16>, vector<32x16xbf16>, vector<16x16xf32> -> vector<16x16xf32>
    %c0_44 = arith.constant 0 : index
    %c1_45 = arith.constant 1 : index
    %c0_46 = arith.constant 0 : index
    %c0_47 = arith.constant 0 : index
    %58 = vector.load %arg8[%c0_44, %c1_45, %c0_46, %c0_47] : memref<1x2x1x16xf32, #tpu.memory_space<vmem>>, vector<1x1x1x16xf32>
    %59 = vector.shape_cast %58 : vector<1x1x1x16xf32> to vector<1x16xf32>
    %60 = vector.broadcast %59 : vector<1x16xf32> to vector<16x16xf32>
    %61 = arith.addf %57, %60 : vector<16x16xf32>
    %62 = vector.shape_cast %61 : vector<16x16xf32> to vector<2x8x16xf32>
    %c0_48 = arith.constant 0 : index
    %c1_49 = arith.constant 1 : index
    %c0_50 = arith.constant 0 : index
    %c0_51 = arith.constant 0 : index
    %63 = vector.load %arg6[%c0_48, %c1_49, %c0_50, %c0_51] : memref<1x2x32x16xbf16, #tpu.memory_space<vmem>>, vector<1x1x32x16xbf16>
    %64 = vector.shape_cast %63 : vector<1x1x32x16xbf16> to vector<32x16xbf16>
    %cst_52 = arith.constant dense<0.000000e+00> : vector<16x16xf32>
    %65 = tpu.matmul %4, %64, %cst_52 {dimension_numbers = #tpu.dot_dimension_numbers<[1], [0], [0], [1], [0, 0, 1, 1], [], []>} : vector<16x32xbf16>, vector<32x16xbf16>, vector<16x16xf32> -> vector<16x16xf32>
    %c0_53 = arith.constant 0 : index
    %c1_54 = arith.constant 1 : index
    %c0_55 = arith.constant 0 : index
    %c0_56 = arith.constant 0 : index
    %66 = vector.load %arg9[%c0_53, %c1_54, %c0_55, %c0_56] : memref<1x2x1x16xf32, #tpu.memory_space<vmem>>, vector<1x1x1x16xf32>
    %67 = vector.shape_cast %66 : vector<1x1x1x16xf32> to vector<1x16xf32>
    %68 = vector.broadcast %67 : vector<1x16xf32> to vector<16x16xf32>
    %69 = arith.addf %65, %68 : vector<16x16xf32>
    %70 = vector.shape_cast %69 : vector<16x16xf32> to vector<2x8x16xf32>
    %c0_57 = arith.constant 0 : index
    %c1_58 = arith.constant 1 : index
    %c0_59 = arith.constant 0 : index
    %c0_60 = arith.constant 0 : index
    %71 = vector.load %arg7[%c0_57, %c1_58, %c0_59, %c0_60] : memref<1x2x32x16xbf16, #tpu.memory_space<vmem>>, vector<1x1x32x16xbf16>
    %72 = vector.shape_cast %71 : vector<1x1x32x16xbf16> to vector<32x16xbf16>
    %cst_61 = arith.constant dense<0.000000e+00> : vector<16x16xf32>
    %73 = tpu.matmul %4, %72, %cst_61 {dimension_numbers = #tpu.dot_dimension_numbers<[1], [0], [0], [1], [0, 0, 1, 1], [], []>} : vector<16x32xbf16>, vector<32x16xbf16>, vector<16x16xf32> -> vector<16x16xf32>
    %c0_62 = arith.constant 0 : index
    %c1_63 = arith.constant 1 : index
    %c0_64 = arith.constant 0 : index
    %c0_65 = arith.constant 0 : index
    %74 = vector.load %arg10[%c0_62, %c1_63, %c0_64, %c0_65] : memref<1x2x1x16xf32, #tpu.memory_space<vmem>>, vector<1x1x1x16xf32>
    %75 = vector.shape_cast %74 : vector<1x1x1x16xf32> to vector<1x16xf32>
    %76 = vector.broadcast %75 : vector<1x16xf32> to vector<16x16xf32>
    %77 = arith.addf %73, %76 : vector<16x16xf32>
    %78 = vector.shape_cast %77 : vector<16x16xf32> to vector<2x8x16xf32>
    %79 = arith.truncf %62 : vector<2x8x16xf32> to vector<2x8x16xbf16>
    %80 = arith.truncf %70 : vector<2x8x16xf32> to vector<2x8x16xbf16>
    "tpu.trace_start"() <{level = 10 : i32, message = "bqd,bkd->bqk"}> : () -> ()
    %cst_66 = arith.constant dense<0.000000e+00> : vector<2x8x8xf32>
    %81 = tpu.matmul %79, %80, %cst_66 {dimension_numbers = #tpu.dot_dimension_numbers<[2], [2], [1], [1], [0, 0, 0, 1, 1, 1], [0], [0]>} : vector<2x8x16xbf16>, vector<2x8x16xbf16>, vector<2x8x8xf32> -> vector<2x8x8xf32>
    "tpu.trace_stop"() : () -> ()
    %82 = vector.broadcast %6 : vector<2x1x8xf32> to vector<2x8x8xf32>
    %83 = arith.addf %81, %82 : vector<2x8x8xf32>
    %cst_67 = arith.constant dense<0xFF800000> : vector<2x8xf32>
    %84 = vector.multi_reduction <maximumf>, %83, %cst_67 [2] : vector<2x8x8xf32> to vector<2x8xf32>
    %85 = vector.shape_cast %84 : vector<2x8xf32> to vector<2x8x1xf32>
    %86 = vector.broadcast %85 : vector<2x8x1xf32> to vector<2x8x8xf32>
    %87 = arith.subf %83, %86 : vector<2x8x8xf32>
    %88 = math.exp %87 : vector<2x8x8xf32>
    %cst_68 = arith.constant dense<0.000000e+00> : vector<2x8xf32>
    %89 = vector.multi_reduction <add>, %88, %cst_68 [2] : vector<2x8x8xf32> to vector<2x8xf32>
    %90 = vector.shape_cast %89 : vector<2x8xf32> to vector<2x8x1xf32>
    %91 = vector.broadcast %90 : vector<2x8x1xf32> to vector<2x8x8xf32>
    %92 = arith.divf %88, %91 : vector<2x8x8xf32>
    %93 = arith.truncf %92 : vector<2x8x8xf32> to vector<2x8x8xbf16>
    %94 = arith.truncf %78 : vector<2x8x16xf32> to vector<2x8x16xbf16>
    "tpu.trace_start"() <{level = 10 : i32, message = "bqk,bkd->bqd"}> : () -> ()
    %cst_69 = arith.constant dense<0.000000e+00> : vector<2x8x16xf32>
    %95 = tpu.matmul %93, %94, %cst_69 {dimension_numbers = #tpu.dot_dimension_numbers<[2], [1], [1], [2], [0, 0, 0, 1, 1, 2], [0], [0]>} : vector<2x8x8xbf16>, vector<2x8x16xbf16>, vector<2x8x16xf32> -> vector<2x8x16xf32>
    "tpu.trace_stop"() : () -> ()
    %96 = vector.shape_cast %95 : vector<2x8x16xf32> to vector<16x16xf32>
    %97 = arith.truncf %96 : vector<16x16xf32> to vector<16x16xbf16>
    %c0_70 = arith.constant 0 : index
    %c1_71 = arith.constant 1 : index
    %c0_72 = arith.constant 0 : index
    %c0_73 = arith.constant 0 : index
    %98 = vector.load %arg11[%c0_70, %c1_71, %c0_72, %c0_73] : memref<1x2x16x32xbf16, #tpu.memory_space<vmem>>, vector<1x1x16x32xbf16>
    %99 = vector.shape_cast %98 : vector<1x1x16x32xbf16> to vector<16x32xbf16>
    %cst_74 = arith.constant dense<0.000000e+00> : vector<16x32xf32>
    %100 = tpu.matmul %97, %99, %cst_74 {dimension_numbers = #tpu.dot_dimension_numbers<[1], [0], [0], [1], [0, 0, 1, 1], [], []>} : vector<16x16xbf16>, vector<16x32xbf16>, vector<16x32xf32> -> vector<16x32xf32>
    %101 = arith.addf %54, %100 : vector<16x32xf32>
    %c0_75 = arith.constant 0 : index
    %c0_76 = arith.constant 0 : index
    %c0_77 = arith.constant 0 : index
    %102 = vector.load %arg12[%c0_75, %c0_76, %c0_77] : memref<1x1x32xf32, #tpu.memory_space<vmem>>, vector<1x1x32xf32>
    %103 = vector.shape_cast %102 : vector<1x1x32xf32> to vector<1x32xf32>
    %104 = vector.broadcast %103 : vector<1x32xf32> to vector<16x32xf32>
    %105 = arith.addf %101, %104 : vector<16x32xf32>
    %106 = arith.addf %3, %105 : vector<16x32xf32>
    %c0_78 = arith.constant 0 : index
    %c0_79 = arith.constant 0 : index
    %c0_80 = arith.constant 0 : index
    %107 = vector.load %arg13[%c0_78, %c0_79, %c0_80] : memref<1x1x32xf32, #tpu.memory_space<vmem>>, vector<1x1x32xf32>
    %108 = vector.shape_cast %107 : vector<1x1x32xf32> to vector<1x32xf32>
    %c0_81 = arith.constant 0 : index
    %c0_82 = arith.constant 0 : index
    %c0_83 = arith.constant 0 : index
    %109 = vector.load %arg14[%c0_81, %c0_82, %c0_83] : memref<1x1x32xf32, #tpu.memory_space<vmem>>, vector<1x1x32xf32>
    %110 = vector.shape_cast %109 : vector<1x1x32xf32> to vector<1x32xf32>
    %cst_84 = arith.constant dense<0.000000e+00> : vector<16xf32>
    %111 = vector.multi_reduction <add>, %106, %cst_84 [1] : vector<16x32xf32> to vector<16xf32>
    %112 = vector.shape_cast %111 : vector<16xf32> to vector<16x1xf32>
    %cst_85 = arith.constant 3.200000e+01 : f32
    %113 = vector.broadcast %cst_85 : f32 to vector<16x1xf32>
    %114 = arith.divf %112, %113 : vector<16x1xf32>
    %115 = vector.broadcast %114 : vector<16x1xf32> to vector<16x32xf32>
    %116 = arith.subf %106, %115 : vector<16x32xf32>
    %117 = arith.mulf %116, %116 : vector<16x32xf32>
    %cst_86 = arith.constant dense<0.000000e+00> : vector<16xf32>
    %118 = vector.multi_reduction <add>, %117, %cst_86 [1] : vector<16x32xf32> to vector<16xf32>
    %119 = vector.shape_cast %118 : vector<16xf32> to vector<16x1xf32>
    %cst_87 = arith.constant 3.200000e+01 : f32
    %120 = vector.broadcast %cst_87 : f32 to vector<16x1xf32>
    %121 = arith.divf %119, %120 : vector<16x1xf32>
    %122 = vector.broadcast %114 : vector<16x1xf32> to vector<16x32xf32>
    %123 = arith.subf %106, %122 : vector<16x32xf32>
    %cst_88 = arith.constant 9.99999996E-13 : f32
    %124 = vector.broadcast %cst_88 : f32 to vector<16x1xf32>
    %125 = arith.addf %121, %124 : vector<16x1xf32>
    %126 = math.rsqrt %125 : vector<16x1xf32>
    %127 = vector.broadcast %126 : vector<16x1xf32> to vector<16x32xf32>
    %128 = arith.mulf %123, %127 : vector<16x32xf32>
    %129 = vector.broadcast %108 : vector<1x32xf32> to vector<16x32xf32>
    %130 = arith.mulf %128, %129 : vector<16x32xf32>
    %131 = vector.broadcast %110 : vector<1x32xf32> to vector<16x32xf32>
    %132 = arith.addf %130, %131 : vector<16x32xf32>
    %133 = arith.truncf %132 : vector<16x32xf32> to vector<16x32xbf16>
    %c0_89 = arith.constant 0 : index
    %c0_90 = arith.constant 0 : index
    %c0_91 = arith.constant 0 : index
    %134 = vector.load %arg15[%c0_89, %c0_90, %c0_91] : memref<1x32x64xbf16, #tpu.memory_space<vmem>>, vector<1x32x64xbf16>
    %135 = vector.shape_cast %134 : vector<1x32x64xbf16> to vector<32x64xbf16>
    %cst_92 = arith.constant dense<0.000000e+00> : vector<16x64xf32>
    %136 = tpu.matmul %133, %135, %cst_92 {dimension_numbers = #tpu.dot_dimension_numbers<[1], [0], [0], [1], [0, 0, 1, 1], [], []>} : vector<16x32xbf16>, vector<32x64xbf16>, vector<16x64xf32> -> vector<16x64xf32>
    %c0_93 = arith.constant 0 : index
    %c0_94 = arith.constant 0 : index
    %c0_95 = arith.constant 0 : index
    %137 = vector.load %arg16[%c0_93, %c0_94, %c0_95] : memref<1x1x64xf32, #tpu.memory_space<vmem>>, vector<1x1x64xf32>
    %138 = vector.shape_cast %137 : vector<1x1x64xf32> to vector<1x64xf32>
    %139 = vector.broadcast %138 : vector<1x64xf32> to vector<16x64xf32>
    %140 = arith.addf %136, %139 : vector<16x64xf32>
    %141 = arith.mulf %140, %140 : vector<16x64xf32>
    %142 = arith.mulf %140, %141 : vector<16x64xf32>
    %cst_96 = arith.constant 4.471500e-02 : f32
    %143 = vector.broadcast %cst_96 : f32 to vector<16x64xf32>
    %144 = arith.mulf %143, %142 : vector<16x64xf32>
    %145 = arith.addf %140, %144 : vector<16x64xf32>
    %cst_97 = arith.constant 0.797884583 : f32
    %146 = vector.broadcast %cst_97 : f32 to vector<16x64xf32>
    %147 = arith.mulf %146, %145 : vector<16x64xf32>
    %148 = math.tanh %147 : vector<16x64xf32>
    %cst_98 = arith.constant 1.000000e+00 : f32
    %149 = vector.broadcast %cst_98 : f32 to vector<16x64xf32>
    %150 = arith.addf %149, %148 : vector<16x64xf32>
    %cst_99 = arith.constant 5.000000e-01 : f32
    %151 = vector.broadcast %cst_99 : f32 to vector<16x64xf32>
    %152 = arith.mulf %151, %150 : vector<16x64xf32>
    %153 = arith.mulf %140, %152 : vector<16x64xf32>
    %154 = arith.truncf %153 : vector<16x64xf32> to vector<16x64xbf16>
    %c0_100 = arith.constant 0 : index
    %c0_101 = arith.constant 0 : index
    %c0_102 = arith.constant 0 : index
    %155 = vector.load %arg17[%c0_100, %c0_101, %c0_102] : memref<1x64x32xbf16, #tpu.memory_space<vmem>>, vector<1x64x32xbf16>
    %156 = vector.shape_cast %155 : vector<1x64x32xbf16> to vector<64x32xbf16>
    %cst_103 = arith.constant dense<0.000000e+00> : vector<16x32xf32>
    %157 = tpu.matmul %154, %156, %cst_103 {dimension_numbers = #tpu.dot_dimension_numbers<[1], [0], [0], [1], [0, 0, 1, 1], [], []>} : vector<16x64xbf16>, vector<64x32xbf16>, vector<16x32xf32> -> vector<16x32xf32>
    %c0_104 = arith.constant 0 : index
    %c0_105 = arith.constant 0 : index
    %c0_106 = arith.constant 0 : index
    %158 = vector.load %arg18[%c0_104, %c0_105, %c0_106] : memref<1x1x32xf32, #tpu.memory_space<vmem>>, vector<1x1x32xf32>
    %159 = vector.shape_cast %158 : vector<1x1x32xf32> to vector<1x32xf32>
    %160 = vector.broadcast %159 : vector<1x32xf32> to vector<16x32xf32>
    %161 = arith.addf %157, %160 : vector<16x32xf32>
    %162 = arith.addf %132, %161 : vector<16x32xf32>
    %c0_107 = arith.constant 0 : index
    %c0_108 = arith.constant 0 : index
    %c0_109 = arith.constant 0 : index
    %163 = vector.load %arg19[%c0_107, %c0_108, %c0_109] : memref<1x1x32xf32, #tpu.memory_space<vmem>>, vector<1x1x32xf32>
    %164 = vector.shape_cast %163 : vector<1x1x32xf32> to vector<1x32xf32>
    %c0_110 = arith.constant 0 : index
    %c0_111 = arith.constant 0 : index
    %c0_112 = arith.constant 0 : index
    %165 = vector.load %arg20[%c0_110, %c0_111, %c0_112] : memref<1x1x32xf32, #tpu.memory_space<vmem>>, vector<1x1x32xf32>
    %166 = vector.shape_cast %165 : vector<1x1x32xf32> to vector<1x32xf32>
    %cst_113 = arith.constant dense<0.000000e+00> : vector<16xf32>
    %167 = vector.multi_reduction <add>, %162, %cst_113 [1] : vector<16x32xf32> to vector<16xf32>
    %168 = vector.shape_cast %167 : vector<16xf32> to vector<16x1xf32>
    %cst_114 = arith.constant 3.200000e+01 : f32
    %169 = vector.broadcast %cst_114 : f32 to vector<16x1xf32>
    %170 = arith.divf %168, %169 : vector<16x1xf32>
    %171 = vector.broadcast %170 : vector<16x1xf32> to vector<16x32xf32>
    %172 = arith.subf %162, %171 : vector<16x32xf32>
    %173 = arith.mulf %172, %172 : vector<16x32xf32>
    %cst_115 = arith.constant dense<0.000000e+00> : vector<16xf32>
    %174 = vector.multi_reduction <add>, %173, %cst_115 [1] : vector<16x32xf32> to vector<16xf32>
    %175 = vector.shape_cast %174 : vector<16xf32> to vector<16x1xf32>
    %cst_116 = arith.constant 3.200000e+01 : f32
    %176 = vector.broadcast %cst_116 : f32 to vector<16x1xf32>
    %177 = arith.divf %175, %176 : vector<16x1xf32>
    %178 = vector.broadcast %170 : vector<16x1xf32> to vector<16x32xf32>
    %179 = arith.subf %162, %178 : vector<16x32xf32>
    %cst_117 = arith.constant 9.99999996E-13 : f32
    %180 = vector.broadcast %cst_117 : f32 to vector<16x1xf32>
    %181 = arith.addf %177, %180 : vector<16x1xf32>
    %182 = math.rsqrt %181 : vector<16x1xf32>
    %183 = vector.broadcast %182 : vector<16x1xf32> to vector<16x32xf32>
    %184 = arith.mulf %179, %183 : vector<16x32xf32>
    %185 = vector.broadcast %164 : vector<1x32xf32> to vector<16x32xf32>
    %186 = arith.mulf %184, %185 : vector<16x32xf32>
    %187 = vector.broadcast %166 : vector<1x32xf32> to vector<16x32xf32>
    %188 = arith.addf %186, %187 : vector<16x32xf32>
    %c0_118 = arith.constant 0 : index
    %c0_119 = arith.constant 0 : index
    %189 = vector.load %arg22[%c0_118, %c0_119] : memref<16x32xf32, #tpu.memory_space<vmem>>, vector<16x32xf32>
    tpu.vector_store %arg22[%c0_118, %c0_119], %188 {strides = array<i32>} : memref<16x32xf32, #tpu.memory_space<vmem>>, vector<16x32xf32>,
    %c1_i32 = arith.constant 1 : i32
    %190 = arith.cmpi eq, %arg0, %c1_i32 : i32
    %191 = arith.extui %190 : i1 to i32
    %c0_i32_120 = arith.constant 0 : i32
    %192 = arith.cmpi ne, %191, %c0_i32_120 : i32
    scf.if %192 {
      %193 = vector.shape_cast %188 : vector<16x32xf32> to vector<2x8x32xf32>
      %194 = vector.extract_strided_slice %193 {offsets = [0, 0, 0], sizes = [2, 1, 32], strides = [1, 1, 1]} : vector<2x8x32xf32> to vector<2x1x32xf32>
      %195 = vector.shape_cast %194 : vector<2x1x32xf32> to vector<2x32xf32>
      %c0_121 = arith.constant 0 : index
      %c0_122 = arith.constant 0 : index
      %196 = vector.load %arg21[%c0_121, %c0_122] : memref<2x32xf32, #tpu.memory_space<vmem>>, vector<2x32xf32>
      tpu.vector_store %arg21[%c0_121, %c0_122], %195 {strides = array<i32>} : memref<2x32xf32, #tpu.memory_space<vmem>>, vector<2x32xf32>,
    } else {
    }
    return
  }
  func.func @transform_0(%arg0: i32) -> (i32, i32, i32) {
    %c0_i32 = arith.constant 0 : i32
    %c0_i32_0 = arith.constant 0 : i32
    %c0_i32_1 = arith.constant 0 : i32
    %c0_i32_2 = arith.constant 0 : i32
    return %c0_i32, %c0_i32_0, %c0_i32_1 : i32, i32, i32
  }
  func.func @transform_1(%arg0: i32) -> (i32, i32) {
    %c0_i32 = arith.constant 0 : i32
    %c0_i32_0 = arith.constant 0 : i32
    %c0_i32_1 = arith.constant 0 : i32
    return %c0_i32, %c0_i32_0 : i32, i32
  }
  func.func @transform_2(%arg0: i32) -> (i32, i32) {
    %c0_i32 = arith.constant 0 : i32
    %c0_i32_0 = arith.constant 0 : i32
    %c0_i32_1 = arith.constant 0 : i32
    return %c0_i32, %c0_i32_0 : i32, i32
  }
  func.func @transform_3(%arg0: i32) -> (i32, i32) {
    %c0_i32 = arith.constant 0 : i32
    %c0_i32_0 = arith.constant 0 : i32
    %c0_i32_1 = arith.constant 0 : i32
    return %c0_i32, %c0_i32_0 : i32, i32
  }
  func.func @transform_4(%arg0: i32) -> (i32, i32, i32, i32) {
    %c0_i32 = arith.constant 0 : i32
    %c0_i32_0 = arith.constant 0 : i32
    %c0_i32_1 = arith.constant 0 : i32
    %c0_i32_2 = arith.constant 0 : i32
    return %arg0, %c0_i32, %c0_i32_0, %c0_i32_1 : i32, i32, i32, i32
  }
  func.func @transform_5(%arg0: i32) -> (i32, i32, i32, i32) {
    %c0_i32 = arith.constant 0 : i32
    %c0_i32_0 = arith.constant 0 : i32
    %c0_i32_1 = arith.constant 0 : i32
    %c0_i32_2 = arith.constant 0 : i32
    return %arg0, %c0_i32, %c0_i32_0, %c0_i32_1 : i32, i32, i32, i32
  }
  func.func @transform_6(%arg0: i32) -> (i32, i32, i32, i32) {
    %c0_i32 = arith.constant 0 : i32
    %c0_i32_0 = arith.constant 0 : i32
    %c0_i32_1 = arith.constant 0 : i32
    %c0_i32_2 = arith.constant 0 : i32
    return %arg0, %c0_i32, %c0_i32_0, %c0_i32_1 : i32, i32, i32, i32
  }
  func.func @transform_7(%arg0: i32) -> (i32, i32, i32, i32) {
    %c0_i32 = arith.constant 0 : i32
    %c0_i32_0 = arith.constant 0 : i32
    %c0_i32_1 = arith.constant 0 : i32
    %c0_i32_2 = arith.constant 0 : i32
    return %arg0, %c0_i32, %c0_i32_0, %c0_i32_1 : i32, i32, i32, i32
  }
  func.func @transform_8(%arg0: i32) -> (i32, i32, i32, i32) {
    %c0_i32 = arith.constant 0 : i32
    %c0_i32_0 = arith.constant 0 : i32
    %c0_i32_1 = arith.constant 0 : i32
    %c0_i32_2 = arith.constant 0 : i32
    return %arg0, %c0_i32, %c0_i32_0, %c0_i32_1 : i32, i32, i32, i32
  }
  func.func @transform_9(%arg0: i32) -> (i32, i32, i32, i32) {
    %c0_i32 = arith.constant 0 : i32
    %c0_i32_0 = arith.constant 0 : i32
    %c0_i32_1 = arith.constant 0 : i32
    %c0_i32_2 = arith.constant 0 : i32
    return %arg0, %c0_i32, %c0_i32_0, %c0_i32_1 : i32, i32, i32, i32
  }
  func.func @transform_10(%arg0: i32) -> (i32, i32, i32, i32) {
    %c0_i32 = arith.constant 0 : i32
    %c0_i32_0 = arith.constant 0 : i32
    %c0_i32_1 = arith.constant 0 : i32
    %c0_i32_2 = arith.constant 0 : i32
    return %arg0, %c0_i32, %c0_i32_0, %c0_i32_1 : i32, i32, i32, i32
  }
  func.func @transform_11(%arg0: i32) -> (i32, i32, i32) {
    %c0_i32 = arith.constant 0 : i32
    %c0_i32_0 = arith.constant 0 : i32
    %c0_i32_1 = arith.constant 0 : i32
    return %arg0, %c0_i32, %c0_i32_0 : i32, i32, i32
  }
  func.func @transform_12(%arg0: i32) -> (i32, i32, i32) {
    %c0_i32 = arith.constant 0 : i32
    %c0_i32_0 = arith.constant 0 : i32
    %c0_i32_1 = arith.constant 0 : i32
    return %arg0, %c0_i32, %c0_i32_0 : i32, i32, i32
  }
  func.func @transform_13(%arg0: i32) -> (i32, i32, i32) {
    %c0_i32 = arith.constant 0 : i32
    %c0_i32_0 = arith.constant 0 : i32
    %c0_i32_1 = arith.constant 0 : i32
    return %arg0, %c0_i32, %c0_i32_0 : i32, i32, i32
  }
  func.func @transform_14(%arg0: i32) -> (i32, i32, i32) {
    %c0_i32 = arith.constant 0 : i32
    %c0_i32_0 = arith.constant 0 : i32
    %c0_i32_1 = arith.constant 0 : i32
    return %arg0, %c0_i32, %c0_i32_0 : i32, i32, i32
  }
  func.func @transform_15(%arg0: i32) -> (i32, i32, i32) {
    %c0_i32 = arith.constant 0 : i32
    %c0_i32_0 = arith.constant 0 : i32
    %c0_i32_1 = arith.constant 0 : i32
    return %arg0, %c0_i32, %c0_i32_0 : i32, i32, i32
  }
  func.func @transform_16(%arg0: i32) -> (i32, i32, i32) {
    %c0_i32 = arith.constant 0 : i32
    %c0_i32_0 = arith.constant 0 : i32
    %c0_i32_1 = arith.constant 0 : i32
    return %arg0, %c0_i32, %c0_i32_0 : i32, i32, i32
  }
  func.func @transform_17(%arg0: i32) -> (i32, i32, i32) {
    %c0_i32 = arith.constant 0 : i32
    %c0_i32_0 = arith.constant 0 : i32
    %c0_i32_1 = arith.constant 0 : i32
    return %arg0, %c0_i32, %c0_i32_0 : i32, i32, i32
  }
  func.func @transform_18(%arg0: i32) -> (i32, i32, i32) {
    %c0_i32 = arith.constant 0 : i32
    %c0_i32_0 = arith.constant 0 : i32
    %c0_i32_1 = arith.constant 0 : i32
    return %arg0, %c0_i32, %c0_i32_0 : i32, i32, i32
  }
  func.func @transform_19(%arg0: i32) -> (i32, i32, i32) {
    %c0_i32 = arith.constant 0 : i32
    %c0_i32_0 = arith.constant 0 : i32
    %c0_i32_1 = arith.constant 0 : i32
    return %arg0, %c0_i32, %c0_i32_0 : i32, i32, i32
  }
  func.func @transform_20(%arg0: i32) -> (i32, i32) {
    %c0_i32 = arith.constant 0 : i32
    %c0_i32_0 = arith.constant 0 : i32
    %c0_i32_1 = arith.constant 0 : i32
    return %c0_i32, %c0_i32_0 : i32, i32
  }
}

</mosaic_0001>

<llo_original>
// kernel: bio_clinical_bert_ft_forward.1
$region0: #{bio_clinical_bert_ft_forward.1}
  #allocation0 [shape = 'u32[]', space=smem, size = 0x4, offset = 0x4, fixed_abs, tag = 'smem constant byte address 0x4 - core index']
  #allocation1 [shape = 'u32[144,128]{1,0:T(1,128)}', space=vmem, size = 0x12000, scoped, tag = 'internal scratch']
  #allocation2 [shape = 'f32[16,32]{1,0:T(8,128)}', space=vmem, size = 0x2000, scoped, tag = 'scratch operand']
  %s0 = inlined_call_operand.vmem [shape: f32[2,8,32], index: 0, kind: input, shape index: {}]
  %s1 = inlined_call_operand.vmem [shape: f32[2,8], index: 1, kind: input, shape index: {}]
  %s2 = inlined_call_operand.vmem [shape: f32[1,32], index: 2, kind: input, shape index: {}]
  %s3 = inlined_call_operand.vmem [shape: f32[1,32], index: 3, kind: input, shape index: {}]
  %s4 = inlined_call_operand.vmem [shape: bf16[2,2,32,16], index: 4, kind: input, shape index: {}]
  %s5 = inlined_call_operand.vmem [shape: bf16[2,2,32,16], index: 5, kind: input, shape index: {}]
  %s6 = inlined_call_operand.vmem [shape: bf16[2,2,32,16], index: 6, kind: input, shape index: {}]
  %s7 = inlined_call_operand.vmem [shape: f32[2,2,1,16], index: 7, kind: input, shape index: {}]
  %s8 = inlined_call_operand.vmem [shape: f32[2,2,1,16], index: 8, kind: input, shape index: {}]
  %s9 = inlined_call_operand.vmem [shape: f32[2,2,1,16], index: 9, kind: input, shape index: {}]
  %s10 = inlined_call_operand.vmem [shape: bf16[2,2,16,32], index: 10, kind: input, shape index: {}]
  %s11 = inlined_call_operand.vmem [shape: f32[2,1,32], index: 11, kind: input, shape index: {}]
  %s12 = inlined_call_operand.vmem [shape: f32[2,1,32], index: 12, kind: input, shape index: {}]
  %s13 = inlined_call_operand.vmem [shape: f32[2,1,32], index: 13, kind: input, shape index: {}]
  %s14 = inlined_call_operand.vmem [shape: bf16[2,32,64], index: 14, kind: input, shape index: {}]
  %s15 = inlined_call_operand.vmem [shape: f32[2,1,64], index: 15, kind: input, shape index: {}]
  %s16 = inlined_call_operand.vmem [shape: bf16[2,64,32], index: 16, kind: input, shape index: {}]
  %s17 = inlined_call_operand.vmem [shape: f32[2,1,32], index: 17, kind: input, shape index: {}]
  %s18 = inlined_call_operand.vmem [shape: f32[2,1,32], index: 18, kind: input, shape index: {}]
  %s19 = inlined_call_operand.vmem [shape: f32[2,1,32], index: 19, kind: input, shape index: {}]
  %s20 = inlined_call_operand.hbm [shape: f32[2,32], index: 20, kind: output, shape index: {}]
  %s21 = sld [smem:[#allocation0]]
  $region121: #{bio_clinical_bert_ft_forward.1} parent=0
    _
  %s23 = ssub.s32 1, %s21
  %s24 = scalar_select 0, %s23, %s21
  $region1: #{bio_clinical_bert_ft_forward.1} parent=0
    #allocation3 [shape = 'u8[1024]{0}', space=vmem, size = 0x400, scoped, tag = 'output window, operand 0, single buffered']
    #allocation4 [shape = 's32[2]{0}', space=sflag, size = 0x8, scoped, tag = 'scoped memory for bio_clinical_bert_ft_forward.1']
    %25 = vsyncpa [#allocation4], 0
    loop: start=0, step=1, limit=4
    $region2: #{bio_clinical_bert_ft_forward.1} parent=1 // loop_pre_header
      _
    $region3: #{bio_clinical_bert_ft_forward.1} parent=1 // loop_header
      %s27 = sphi 0, %s31
      %p28 = scmp.ge.s32.totalorder %s27, 4
      %s35 = sphi 0, %s35
      %s37 = sphi 0, %s35
      %s38 = sphi 0, %s37
      %s52 = sphi 0, %s38
      %s56 = sphi 0, %s56
      %s58 = sphi 0, %s56
      %s59 = sphi 0, %s58
      %s73 = sphi 0, %s59
      %s77 = sphi 0, %s77
      %s79 = sphi 0, %s77
      %s80 = sphi 0, %s79
      %s94 = sphi 0, %s80
      %s98 = sphi 0, %s98
      %s100 = sphi 0, %s98
      %s101 = sphi 0, %s100
      %s115 = sphi 0, %s101
      %s121 = sphi 0, %s123
      %s124 = sphi 0, %s121
      %s125 = sphi 0, %s124
      %s141 = sphi 0, %s125
      %s147 = sphi 0, %s149
      %s150 = sphi 0, %s147
      %s151 = sphi 0, %s150
      %s167 = sphi 0, %s151
      %s173 = sphi 0, %s175
      %s176 = sphi 0, %s173
      %s177 = sphi 0, %s176
      %s193 = sphi 0, %s177
      %s199 = sphi 0, %s201
      %s202 = sphi 0, %s199
      %s203 = sphi 0, %s202
      %s219 = sphi 0, %s203
      %s225 = sphi 0, %s227
      %s228 = sphi 0, %s225
      %s229 = sphi 0, %s228
      %s245 = sphi 0, %s229
      %s251 = sphi 0, %s253
      %s254 = sphi 0, %s251
      %s255 = sphi 0, %s254
      %s271 = sphi 0, %s255
      %s277 = sphi 0, %s279
      %s280 = sphi 0, %s277
      %s281 = sphi 0, %s280
      %s297 = sphi 0, %s281
      %s303 = sphi 0, %s305
      %s306 = sphi 0, %s303
      %s307 = sphi 0, %s306
      %s323 = sphi 0, %s307
      %s329 = sphi 0, %s331
      %s332 = sphi 0, %s329
      %s333 = sphi 0, %s332
      %s349 = sphi 0, %s333
      %s355 = sphi 0, %s357
      %s358 = sphi 0, %s355
      %s359 = sphi 0, %s358
      %s375 = sphi 0, %s359
      %s381 = sphi 0, %s383
      %s384 = sphi 0, %s381
      %s385 = sphi 0, %s384
      %s401 = sphi 0, %s385
      %s407 = sphi 0, %s409
      %s410 = sphi 0, %s407
      %s411 = sphi 0, %s410
      %s427 = sphi 0, %s411
      %s433 = sphi 0, %s435
      %s436 = sphi 0, %s433
      %s437 = sphi 0, %s436
      %s453 = sphi 0, %s437
      %s459 = sphi 0, %s461
      %s462 = sphi 0, %s459
      %s463 = sphi 0, %s462
      %s479 = sphi 0, %s463
      %s485 = sphi 0, %s487
      %s488 = sphi 0, %s485
      %s489 = sphi 0, %s488
      %s505 = sphi 0, %s489
      %s511 = sphi 0, %s513
      %s514 = sphi 0, %s511
      %s515 = sphi 0, %s514
      %s531 = sphi 0, %s515
      %s535 = sphi 0, %s535
      %s537 = sphi 0, %s535
      %s538 = sphi 0, %s537
      %s552 = sphi 0, %s538
    $region4: #{bio_clinical_bert_ft_forward.1} parent=1 // loop_header_branch
      %30 = sbr.rel (%p28) target = $region8
    $region5: #{bio_clinical_bert_ft_forward.1} parent=1 // loop_body
      %s32 = ssub.s32 %s27, 1
      %s33 = ssub.s32 %s27, 2
      %s34 = sadd.s32 %s27, 1
      %s36 = sadd.s32 %s35, 1
      %p39 = scmp.eq.s32.totalorder %s27, 1
      %p40 = scmp.ne.s32.totalorder %s35, %s37
      %p41 = scmp.eq.s32.totalorder %s27, 0
      %p42 = por %p40, %p41
      %p43 = scmp.ne.s32.totalorder %s35, %s37
      %p44 = scmp.eq.s32.totalorder %s32, 1
      %p45 = por %p43, %p44
      %p46 = scmp.ne.s32.totalorder %s37, %s38
      %p47 = scmp.eq.s32.totalorder %s32, 0
      %p48 = por %p46, %p47
      %p49 = scmp.ne.s32.totalorder %s37, %s38
      %p50 = scmp.eq.s32.totalorder %s33, 1
      %p51 = por %p49, %p50
      %p53 = scmp.ne.s32.totalorder %s38, %s52
      %p54 = scmp.eq.s32.totalorder %s33, 0
      %p55 = por %p53, %p54
      %s57 = sadd.s32 %s56, 1
      %p60 = scmp.eq.s32.totalorder %s27, 1
      %p61 = scmp.ne.s32.totalorder %s56, %s58
      %p62 = scmp.eq.s32.totalorder %s27, 0
      %p63 = por %p61, %p62
      %p64 = scmp.ne.s32.totalorder %s56, %s58
      %p65 = scmp.eq.s32.totalorder %s32, 1
      %p66 = por %p64, %p65
      %p67 = scmp.ne.s32.totalorder %s58, %s59
      %p68 = scmp.eq.s32.totalorder %s32, 0
      %p69 = por %p67, %p68
      %p70 = scmp.ne.s32.totalorder %s58, %s59
      %p71 = scmp.eq.s32.totalorder %s33, 1
      %p72 = por %p70, %p71
      %p74 = scmp.ne.s32.totalorder %s59, %s73
      %p75 = scmp.eq.s32.totalorder %s33, 0
      %p76 = por %p74, %p75
      %s78 = sadd.s32 %s77, 1
      %p81 = scmp.eq.s32.totalorder %s27, 1
      %p82 = scmp.ne.s32.totalorder %s77, %s79
      %p83 = scmp.eq.s32.totalorder %s27, 0
      %p84 = por %p82, %p83
      %p85 = scmp.ne.s32.totalorder %s77, %s79
      %p86 = scmp.eq.s32.totalorder %s32, 1
      %p87 = por %p85, %p86
      %p88 = scmp.ne.s32.totalorder %s79, %s80
      %p89 = scmp.eq.s32.totalorder %s32, 0
      %p90 = por %p88, %p89
      %p91 = scmp.ne.s32.totalorder %s79, %s80
      %p92 = scmp.eq.s32.totalorder %s33, 1
      %p93 = por %p91, %p92
      %p95 = scmp.ne.s32.totalorder %s80, %s94
      %p96 = scmp.eq.s32.totalorder %s33, 0
      %p97 = por %p95, %p96
      %s99 = sadd.s32 %s98, 1
      %p102 = scmp.eq.s32.totalorder %s27, 1
      %p103 = scmp.ne.s32.totalorder %s98, %s100
      %p104 = scmp.eq.s32.totalorder %s27, 0
      %p105 = por %p103, %p104
      %p106 = scmp.ne.s32.totalorder %s98, %s100
      %p107 = scmp.eq.s32.totalorder %s32, 1
      %p108 = por %p106, %p107
      %p109 = scmp.ne.s32.totalorder %s100, %s101
      %p110 = scmp.eq.s32.totalorder %s32, 0
      %p111 = por %p109, %p110
      %p112 = scmp.ne.s32.totalorder %s100, %s101
      %p113 = scmp.eq.s32.totalorder %s33, 1
      %p114 = por %p112, %p113
      %p116 = scmp.ne.s32.totalorder %s101, %s115
      %p117 = scmp.eq.s32.totalorder %s33, 0
      %p118 = por %p116, %p117
      %s119 = ssub.s32 %s27, %s34
      %p120 = scmp.eq.s32.totalorder %s119, 0
      %s122 = sadd.s32 %s121, 1
      %s123 = scalar_select %p120, %s121, %s122
      %p126 = pneg %p120
      %p127 = scmp.eq.s32.totalorder %s27, 1
      %p128 = por %p126, %p127
      %p129 = scmp.ne.s32.totalorder %s121, %s124
      %p130 = scmp.eq.s32.totalorder %s27, 0
      %p131 = por %p129, %p130
      %p132 = scmp.ne.s32.totalorder %s121, %s124
      %p133 = scmp.eq.s32.totalorder %s32, 1
      %p134 = por %p132, %p133
      %p135 = scmp.ne.s32.totalorder %s124, %s125
      %p136 = scmp.eq.s32.totalorder %s32, 0
      %p137 = por %p135, %p136
      %p138 = scmp.ne.s32.totalorder %s124, %s125
      %p139 = scmp.eq.s32.totalorder %s33, 1
      %p140 = por %p138, %p139
      %p142 = scmp.ne.s32.totalorder %s125, %s141
      %p143 = scmp.eq.s32.totalorder %s33, 0
      %p144 = por %p142, %p143
      %s145 = ssub.s32 %s27, %s34
      %p146 = scmp.eq.s32.totalorder %s145, 0
      %s148 = sadd.s32 %s147, 1
      %s149 = scalar_select %p146, %s147, %s148
      %p152 = pneg %p146
      %p153 = scmp.eq.s32.totalorder %s27, 1
      %p154 = por %p152, %p153
      %p155 = scmp.ne.s32.totalorder %s147, %s150
      %p156 = scmp.eq.s32.totalorder %s27, 0
      %p157 = por %p155, %p156
      %p158 = scmp.ne.s32.totalorder %s147, %s150
      %p159 = scmp.eq.s32.totalorder %s32, 1
      %p160 = por %p158, %p159
      %p161 = scmp.ne.s32.totalorder %s150, %s151
      %p162 = scmp.eq.s32.totalorder %s32, 0
      %p163 = por %p161, %p162
      %p164 = scmp.ne.s32.totalorder %s150, %s151
      %p165 = scmp.eq.s32.totalorder %s33, 1
      %p166 = por %p164, %p165
      %p168 = scmp.ne.s32.totalorder %s151, %s167
      %p169 = scmp.eq.s32.totalorder %s33, 0
      %p170 = por %p168, %p169
      %s171 = ssub.s32 %s27, %s34
      %p172 = scmp.eq.s32.totalorder %s171, 0
      %s174 = sadd.s32 %s173, 1
      %s175 = scalar_select %p172, %s173, %s174
      %p178 = pneg %p172
      %p179 = scmp.eq.s32.totalorder %s27, 1
      %p180 = por %p178, %p179
      %p181 = scmp.ne.s32.totalorder %s173, %s176
      %p182 = scmp.eq.s32.totalorder %s27, 0
      %p183 = por %p181, %p182
      %p184 = scmp.ne.s32.totalorder %s173, %s176
      %p185 = scmp.eq.s32.totalorder %s32, 1
      %p186 = por %p184, %p185
      %p187 = scmp.ne.s32.totalorder %s176, %s177
      %p188 = scmp.eq.s32.totalorder %s32, 0
      %p189 = por %p187, %p188
      %p190 = scmp.ne.s32.totalorder %s176, %s177
      %p191 = scmp.eq.s32.totalorder %s33, 1
      %p192 = por %p190, %p191
      %p194 = scmp.ne.s32.totalorder %s177, %s193
      %p195 = scmp.eq.s32.totalorder %s33, 0
      %p196 = por %p194, %p195
      %s197 = ssub.s32 %s27, %s34
      %p198 = scmp.eq.s32.totalorder %s197, 0
      %s200 = sadd.s32 %s199, 1
      %s201 = scalar_select %p198, %s199, %s200
      %p204 = pneg %p198
      %p205 = scmp.eq.s32.totalorder %s27, 1
      %p206 = por %p204, %p205
      %p207 = scmp.ne.s32.totalorder %s199, %s202
      %p208 = scmp.eq.s32.totalorder %s27, 0
      %p209 = por %p207, %p208
      %p210 = scmp.ne.s32.totalorder %s199, %s202
      %p211 = scmp.eq.s32.totalorder %s32, 1
      %p212 = por %p210, %p211
      %p213 = scmp.ne.s32.totalorder %s202, %s203
      %p214 = scmp.eq.s32.totalorder %s32, 0
      %p215 = por %p213, %p214
      %p216 = scmp.ne.s32.totalorder %s202, %s203
      %p217 = scmp.eq.s32.totalorder %s33, 1
      %p218 = por %p216, %p217
      %p220 = scmp.ne.s32.totalorder %s203, %s219
      %p221 = scmp.eq.s32.totalorder %s33, 0
      %p222 = por %p220, %p221
      %s223 = ssub.s32 %s27, %s34
      %p224 = scmp.eq.s32.totalorder %s223, 0
      %s226 = sadd.s32 %s225, 1
      %s227 = scalar_select %p224, %s225, %s226
      %p230 = pneg %p224
      %p231 = scmp.eq.s32.totalorder %s27, 1
      %p232 = por %p230, %p231
      %p233 = scmp.ne.s32.totalorder %s225, %s228
      %p234 = scmp.eq.s32.totalorder %s27, 0
      %p235 = por %p233, %p234
      %p236 = scmp.ne.s32.totalorder %s225, %s228
      %p237 = scmp.eq.s32.totalorder %s32, 1
      %p238 = por %p236, %p237
      %p239 = scmp.ne.s32.totalorder %s228, %s229
      %p240 = scmp.eq.s32.totalorder %s32, 0
      %p241 = por %p239, %p240
      %p242 = scmp.ne.s32.totalorder %s228, %s229
      %p243 = scmp.eq.s32.totalorder %s33, 1
      %p244 = por %p242, %p243
      %p246 = scmp.ne.s32.totalorder %s229, %s245
      %p247 = scmp.eq.s32.totalorder %s33, 0
      %p248 = por %p246, %p247
      %s249 = ssub.s32 %s27, %s34
      %p250 = scmp.eq.s32.totalorder %s249, 0
      %s252 = sadd.s32 %s251, 1
      %s253 = scalar_select %p250, %s251, %s252
      %p256 = pneg %p250
      %p257 = scmp.eq.s32.totalorder %s27, 1
      %p258 = por %p256, %p257
      %p259 = scmp.ne.s32.totalorder %s251, %s254
      %p260 = scmp.eq.s32.totalorder %s27, 0
      %p261 = por %p259, %p260
      %p262 = scmp.ne.s32.totalorder %s251, %s254
      %p263 = scmp.eq.s32.totalorder %s32, 1
      %p264 = por %p262, %p263
      %p265 = scmp.ne.s32.totalorder %s254, %s255
      %p266 = scmp.eq.s32.totalorder %s32, 0
      %p267 = por %p265, %p266
      %p268 = scmp.ne.s32.totalorder %s254, %s255
      %p269 = scmp.eq.s32.totalorder %s33, 1
      %p270 = por %p268, %p269
      %p272 = scmp.ne.s32.totalorder %s255, %s271
      %p273 = scmp.eq.s32.totalorder %s33, 0
      %p274 = por %p272, %p273
      %s275 = ssub.s32 %s27, %s34
      %p276 = scmp.eq.s32.totalorder %s275, 0
      %s278 = sadd.s32 %s277, 1
      %s279 = scalar_select %p276, %s277, %s278
      %p282 = pneg %p276
      %p283 = scmp.eq.s32.totalorder %s27, 1
      %p284 = por %p282, %p283
      %p285 = scmp.ne.s32.totalorder %s277, %s280
      %p286 = scmp.eq.s32.totalorder %s27, 0
      %p287 = por %p285, %p286
      %p288 = scmp.ne.s32.totalorder %s277, %s280
      %p289 = scmp.eq.s32.totalorder %s32, 1
      %p290 = por %p288, %p289
      %p291 = scmp.ne.s32.totalorder %s280, %s281
      %p292 = scmp.eq.s32.totalorder %s32, 0
      %p293 = por %p291, %p292
      %p294 = scmp.ne.s32.totalorder %s280, %s281
      %p295 = scmp.eq.s32.totalorder %s33, 1
      %p296 = por %p294, %p295
      %p298 = scmp.ne.s32.totalorder %s281, %s297
      %p299 = scmp.eq.s32.totalorder %s33, 0
      %p300 = por %p298, %p299
      %s301 = ssub.s32 %s27, %s34
      %p302 = scmp.eq.s32.totalorder %s301, 0
      %s304 = sadd.s32 %s303, 1
      %s305 = scalar_select %p302, %s303, %s304
      %p308 = pneg %p302
      %p309 = scmp.eq.s32.totalorder %s27, 1
      %p310 = por %p308, %p309
      %p311 = scmp.ne.s32.totalorder %s303, %s306
      %p312 = scmp.eq.s32.totalorder %s27, 0
      %p313 = por %p311, %p312
      %p314 = scmp.ne.s32.totalorder %s303, %s306
      %p315 = scmp.eq.s32.totalorder %s32, 1
      %p316 = por %p314, %p315
      %p317 = scmp.ne.s32.totalorder %s306, %s307
      %p318 = scmp.eq.s32.totalorder %s32, 0
      %p319 = por %p317, %p318
      %p320 = scmp.ne.s32.totalorder %s306, %s307
      %p321 = scmp.eq.s32.totalorder %s33, 1
      %p322 = por %p320, %p321
      %p324 = scmp.ne.s32.totalorder %s307, %s323
      %p325 = scmp.eq.s32.totalorder %s33, 0
      %p326 = por %p324, %p325
      %s327 = ssub.s32 %s27, %s34
      %p328 = scmp.eq.s32.totalorder %s327, 0
      %s330 = sadd.s32 %s329, 1
      %s331 = scalar_select %p328, %s329, %s330
      %p334 = pneg %p328
      %p335 = scmp.eq.s32.totalorder %s27, 1
      %p336 = por %p334, %p335
      %p337 = scmp.ne.s32.totalorder %s329, %s332
      %p338 = scmp.eq.s32.totalorder %s27, 0
      %p339 = por %p337, %p338
      %p340 = scmp.ne.s32.totalorder %s329, %s332
      %p341 = scmp.eq.s32.totalorder %s32, 1
      %p342 = por %p340, %p341
      %p343 = scmp.ne.s32.totalorder %s332, %s333
      %p344 = scmp.eq.s32.totalorder %s32, 0
      %p345 = por %p343, %p344
      %p346 = scmp.ne.s32.totalorder %s332, %s333
      %p347 = scmp.eq.s32.totalorder %s33, 1
      %p348 = por %p346, %p347
      %p350 = scmp.ne.s32.totalorder %s333, %s349
      %p351 = scmp.eq.s32.totalorder %s33, 0
      %p352 = por %p350, %p351
      %s353 = ssub.s32 %s27, %s34
      %p354 = scmp.eq.s32.totalorder %s353, 0
      %s356 = sadd.s32 %s355, 1
      %s357 = scalar_select %p354, %s355, %s356
      %p360 = pneg %p354
      %p361 = scmp.eq.s32.totalorder %s27, 1
      %p362 = por %p360, %p361
      %p363 = scmp.ne.s32.totalorder %s355, %s358
      %p364 = scmp.eq.s32.totalorder %s27, 0
      %p365 = por %p363, %p364
      %p366 = scmp.ne.s32.totalorder %s355, %s358
      %p367 = scmp.eq.s32.totalorder %s32, 1
      %p368 = por %p366, %p367
      %p369 = scmp.ne.s32.totalorder %s358, %s359
      %p370 = scmp.eq.s32.totalorder %s32, 0
      %p371 = por %p369, %p370
      %p372 = scmp.ne.s32.totalorder %s358, %s359
      %p373 = scmp.eq.s32.totalorder %s33, 1
      %p374 = por %p372, %p373
      %p376 = scmp.ne.s32.totalorder %s359, %s375
      %p377 = scmp.eq.s32.totalorder %s33, 0
      %p378 = por %p376, %p377
      %s379 = ssub.s32 %s27, %s34
      %p380 = scmp.eq.s32.totalorder %s379, 0
      %s382 = sadd.s32 %s381, 1
      %s383 = scalar_select %p380, %s381, %s382
      %p386 = pneg %p380
      %p387 = scmp.eq.s32.totalorder %s27, 1
      %p388 = por %p386, %p387
      %p389 = scmp.ne.s32.totalorder %s381, %s384
      %p390 = scmp.eq.s32.totalorder %s27, 0
      %p391 = por %p389, %p390
      %p392 = scmp.ne.s32.totalorder %s381, %s384
      %p393 = scmp.eq.s32.totalorder %s32, 1
      %p394 = por %p392, %p393
      %p395 = scmp.ne.s32.totalorder %s384, %s385
      %p396 = scmp.eq.s32.totalorder %s32, 0
      %p397 = por %p395, %p396
      %p398 = scmp.ne.s32.totalorder %s384, %s385
      %p399 = scmp.eq.s32.totalorder %s33, 1
      %p400 = por %p398, %p399
      %p402 = scmp.ne.s32.totalorder %s385, %s401
      %p403 = scmp.eq.s32.totalorder %s33, 0
      %p404 = por %p402, %p403
      %s405 = ssub.s32 %s27, %s34
      %p406 = scmp.eq.s32.totalorder %s405, 0
      %s408 = sadd.s32 %s407, 1
      %s409 = scalar_select %p406, %s407, %s408
      %p412 = pneg %p406
      %p413 = scmp.eq.s32.totalorder %s27, 1
      %p414 = por %p412, %p413
      %p415 = scmp.ne.s32.totalorder %s407, %s410
      %p416 = scmp.eq.s32.totalorder %s27, 0
      %p417 = por %p415, %p416
      %p418 = scmp.ne.s32.totalorder %s407, %s410
      %p419 = scmp.eq.s32.totalorder %s32, 1
      %p420 = por %p418, %p419
      %p421 = scmp.ne.s32.totalorder %s410, %s411
      %p422 = scmp.eq.s32.totalorder %s32, 0
      %p423 = por %p421, %p422
      %p424 = scmp.ne.s32.totalorder %s410, %s411
      %p425 = scmp.eq.s32.totalorder %s33, 1
      %p426 = por %p424, %p425
      %p428 = scmp.ne.s32.totalorder %s411, %s427
      %p429 = scmp.eq.s32.totalorder %s33, 0
      %p430 = por %p428, %p429
      %s431 = ssub.s32 %s27, %s34
      %p432 = scmp.eq.s32.totalorder %s431, 0
      %s434 = sadd.s32 %s433, 1
      %s435 = scalar_select %p432, %s433, %s434
      %p438 = pneg %p432
      %p439 = scmp.eq.s32.totalorder %s27, 1
      %p440 = por %p438, %p439
      %p441 = scmp.ne.s32.totalorder %s433, %s436
      %p442 = scmp.eq.s32.totalorder %s27, 0
      %p443 = por %p441, %p442
      %p444 = scmp.ne.s32.totalorder %s433, %s436
      %p445 = scmp.eq.s32.totalorder %s32, 1
      %p446 = por %p444, %p445
      %p447 = scmp.ne.s32.totalorder %s436, %s437
      %p448 = scmp.eq.s32.totalorder %s32, 0
      %p449 = por %p447, %p448
      %p450 = scmp.ne.s32.totalorder %s436, %s437
      %p451 = scmp.eq.s32.totalorder %s33, 1
      %p452 = por %p450, %p451
      %p454 = scmp.ne.s32.totalorder %s437, %s453
      %p455 = scmp.eq.s32.totalorder %s33, 0
      %p456 = por %p454, %p455
      %s457 = ssub.s32 %s27, %s34
      %p458 = scmp.eq.s32.totalorder %s457, 0
      %s460 = sadd.s32 %s459, 1
      %s461 = scalar_select %p458, %s459, %s460
      %p464 = pneg %p458
      %p465 = scmp.eq.s32.totalorder %s27, 1
      %p466 = por %p464, %p465
      %p467 = scmp.ne.s32.totalorder %s459, %s462
      %p468 = scmp.eq.s32.totalorder %s27, 0
      %p469 = por %p467, %p468
      %p470 = scmp.ne.s32.totalorder %s459, %s462
      %p471 = scmp.eq.s32.totalorder %s32, 1
      %p472 = por %p470, %p471
      %p473 = scmp.ne.s32.totalorder %s462, %s463
      %p474 = scmp.eq.s32.totalorder %s32, 0
      %p475 = por %p473, %p474
      %p476 = scmp.ne.s32.totalorder %s462, %s463
      %p477 = scmp.eq.s32.totalorder %s33, 1
      %p478 = por %p476, %p477
      %p480 = scmp.ne.s32.totalorder %s463, %s479
      %p481 = scmp.eq.s32.totalorder %s33, 0
      %p482 = por %p480, %p481
      %s483 = ssub.s32 %s27, %s34
      %p484 = scmp.eq.s32.totalorder %s483, 0
      %s486 = sadd.s32 %s485, 1
      %s487 = scalar_select %p484, %s485, %s486
      %p490 = pneg %p484
      %p491 = scmp.eq.s32.totalorder %s27, 1
      %p492 = por %p490, %p491
      %p493 = scmp.ne.s32.totalorder %s485, %s488
      %p494 = scmp.eq.s32.totalorder %s27, 0
      %p495 = por %p493, %p494
      %p496 = scmp.ne.s32.totalorder %s485, %s488
      %p497 = scmp.eq.s32.totalorder %s32, 1
      %p498 = por %p496, %p497
      %p499 = scmp.ne.s32.totalorder %s488, %s489
      %p500 = scmp.eq.s32.totalorder %s32, 0
      %p501 = por %p499, %p500
      %p502 = scmp.ne.s32.totalorder %s488, %s489
      %p503 = scmp.eq.s32.totalorder %s33, 1
      %p504 = por %p502, %p503
      %p506 = scmp.ne.s32.totalorder %s489, %s505
      %p507 = scmp.eq.s32.totalorder %s33, 0
      %p508 = por %p506, %p507
      %s509 = ssub.s32 %s27, %s34
      %p510 = scmp.eq.s32.totalorder %s509, 0
      %s512 = sadd.s32 %s511, 1
      %s513 = scalar_select %p510, %s511, %s512
      %p516 = pneg %p510
      %p517 = scmp.eq.s32.totalorder %s27, 1
      %p518 = por %p516, %p517
      %p519 = scmp.ne.s32.totalorder %s511, %s514
      %p520 = scmp.eq.s32.totalorder %s27, 0
      %p521 = por %p519, %p520
      %p522 = scmp.ne.s32.totalorder %s511, %s514
      %p523 = scmp.eq.s32.totalorder %s32, 1
      %p524 = por %p522, %p523
      %p525 = scmp.ne.s32.totalorder %s514, %s515
      %p526 = scmp.eq.s32.totalorder %s32, 0
      %p527 = por %p525, %p526
      %p528 = scmp.ne.s32.totalorder %s514, %s515
      %p529 = scmp.eq.s32.totalorder %s33, 1
      %p530 = por %p528, %p529
      %p532 = scmp.ne.s32.totalorder %s515, %s531
      %p533 = scmp.eq.s32.totalorder %s33, 0
      %p534 = por %p532, %p533
      %s536 = sadd.s32 %s535, 1
      %p539 = scmp.eq.s32.totalorder %s27, 1
      %p540 = scmp.ne.s32.totalorder %s535, %s537
      %p541 = scmp.eq.s32.totalorder %s27, 0
      %p542 = por %p540, %p541
      %p543 = scmp.ne.s32.totalorder %s535, %s537
      %p544 = scmp.eq.s32.totalorder %s32, 1
      %p545 = por %p543, %p544
      %p546 = scmp.ne.s32.totalorder %s537, %s538
      %p547 = scmp.eq.s32.totalorder %s32, 0
      %p548 = por %p546, %p547
      %p549 = scmp.ne.s32.totalorder %s537, %s538
      %p550 = scmp.eq.s32.totalorder %s33, 1
      %p551 = por %p549, %p550
      %p553 = scmp.ne.s32.totalorder %s538, %s552
      %p554 = scmp.eq.s32.totalorder %s33, 0
      %p555 = por %p553, %p554
      %p556 = scmp.le.s32.totalorder 1, %s27
      %p557 = scmp.lt.s32.totalorder %s27, 3
      %p558 = pnand %p556, %p557
      %p559 = pneg %p558
      // Predicated region
      $region9: #{bio_clinical_bert_ft_forward.1} parent=5 // pred_check
        _
      $region10: #{bio_clinical_bert_ft_forward.1} parent=5 // pred_check_branch
        %561 = sbr.rel (%p558) target = $region12
      $region11: #{bio_clinical_bert_ft_forward.1} parent=5 // pred_region
        %s562 = ssub.s32 %s27, 1
        // Predicated region
        $region13: #{bio_clinical_bert_ft_forward.1} parent=11 // pred_check
          %p563 = pneg %p48
        $region14: #{bio_clinical_bert_ft_forward.1} parent=11 // pred_check_branch
          %565 = sbr.rel (%p563) target = $region16
        $region15: #{bio_clinical_bert_ft_forward.1} parent=11 // pred_region
          _
        $region16: #{bio_clinical_bert_ft_forward.1} parent=11 // pred_fallthru
          _
        // Predicated region
        $region17: #{bio_clinical_bert_ft_forward.1} parent=11 // pred_check
          %p566 = pneg %p69
        $region18: #{bio_clinical_bert_ft_forward.1} parent=11 // pred_check_branch
          %568 = sbr.rel (%p566) target = $region20
        $region19: #{bio_clinical_bert_ft_forward.1} parent=11 // pred_region
          _
        $region20: #{bio_clinical_bert_ft_forward.1} parent=11 // pred_fallthru
          _
        // Predicated region
        $region21: #{bio_clinical_bert_ft_forward.1} parent=11 // pred_check
          %p569 = pneg %p90
        $region22: #{bio_clinical_bert_ft_forward.1} parent=11 // pred_check_branch
          %571 = sbr.rel (%p569) target = $region24
        $region23: #{bio_clinical_bert_ft_forward.1} parent=11 // pred_region
          _
        $region24: #{bio_clinical_bert_ft_forward.1} parent=11 // pred_fallthru
          _
        // Predicated region
        $region25: #{bio_clinical_bert_ft_forward.1} parent=11 // pred_check
          %p572 = pneg %p111
        $region26: #{bio_clinical_bert_ft_forward.1} parent=11 // pred_check_branch
          %574 = sbr.rel (%p572) target = $region28
        $region27: #{bio_clinical_bert_ft_forward.1} parent=11 // pred_region
          _
        $region28: #{bio_clinical_bert_ft_forward.1} parent=11 // pred_fallthru
          _
      $region12: #{bio_clinical_bert_ft_forward.1} parent=5 // pred_fallthru
        _
      %p575 = scmp.lt.s32.totalorder %s27, 2
      // Predicated region
      $region29: #{bio_clinical_bert_ft_forward.1} parent=5 // pred_check
        %p576 = pneg %p575
      $region30: #{bio_clinical_bert_ft_forward.1} parent=5 // pred_check_branch
        %578 = sbr.rel (%p576) target = $region32
      $region31: #{bio_clinical_bert_ft_forward.1} parent=5 // pred_region
        // Predicated region
        $region33: #{bio_clinical_bert_ft_forward.1} parent=31 // pred_check
          %p579 = pneg %p131
        $region34: #{bio_clinical_bert_ft_forward.1} parent=31 // pred_check_branch
          %581 = sbr.rel (%p579) target = $region36
        $region35: #{bio_clinical_bert_ft_forward.1} parent=31 // pred_region
          %p582 = scmp.lt.s32.totalorder %s27, 1
          %s583 = scalar_select %p582, %s27, 1
          %s584 = smul.addr %s583, 8
          %s585 = smul.addr %s584, 4
          %s586 = scalar_lea.vmem %s4, %s585
        $region36: #{bio_clinical_bert_ft_forward.1} parent=31 // pred_fallthru
          _
        // Predicated region
        $region37: #{bio_clinical_bert_ft_forward.1} parent=31 // pred_check
          %p587 = pneg %p157
        $region38: #{bio_clinical_bert_ft_forward.1} parent=31 // pred_check_branch
          %589 = sbr.rel (%p587) target = $region40
        $region39: #{bio_clinical_bert_ft_forward.1} parent=31 // pred_region
          %p590 = scmp.lt.s32.totalorder %s27, 1
          %s591 = scalar_select %p590, %s27, 1
          %s592 = smul.addr %s591, 8
          %s593 = smul.addr %s592, 4
          %s594 = scalar_lea.vmem %s5, %s593
        $region40: #{bio_clinical_bert_ft_forward.1} parent=31 // pred_fallthru
          _
        // Predicated region
        $region41: #{bio_clinical_bert_ft_forward.1} parent=31 // pred_check
          %p595 = pneg %p183
        $region42: #{bio_clinical_bert_ft_forward.1} parent=31 // pred_check_branch
          %597 = sbr.rel (%p595) target = $region44
        $region43: #{bio_clinical_bert_ft_forward.1} parent=31 // pred_region
          %p598 = scmp.lt.s32.totalorder %s27, 1
          %s599 = scalar_select %p598, %s27, 1
          %s600 = smul.addr %s599, 8
          %s601 = smul.addr %s600, 4
          %s602 = scalar_lea.vmem %s6, %s601
        $region44: #{bio_clinical_bert_ft_forward.1} parent=31 // pred_fallthru
          _
        // Predicated region
        $region45: #{bio_clinical_bert_ft_forward.1} parent=31 // pred_check
          %p603 = pneg %p209
        $region46: #{bio_clinical_bert_ft_forward.1} parent=31 // pred_check_branch
          %605 = sbr.rel (%p603) target = $region48
        $region47: #{bio_clinical_bert_ft_forward.1} parent=31 // pred_region
          %p606 = scmp.lt.s32.totalorder %s27, 1
          %s607 = scalar_select %p606, %s27, 1
          %s608 = smul.addr %s607, 2
          %s609 = scalar_lea.vmem %s7, %s608
        $region48: #{bio_clinical_bert_ft_forward.1} parent=31 // pred_fallthru
          _
        // Predicated region
        $region49: #{bio_clinical_bert_ft_forward.1} parent=31 // pred_check
          %p610 = pneg %p235
        $region50: #{bio_clinical_bert_ft_forward.1} parent=31 // pred_check_branch
          %612 = sbr.rel (%p610) target = $region52
        $region51: #{bio_clinical_bert_ft_forward.1} parent=31 // pred_region
          %p613 = scmp.lt.s32.totalorder %s27, 1
          %s614 = scalar_select %p613, %s27, 1
          %s615 = smul.addr %s614, 2
          %s616 = scalar_lea.vmem %s8, %s615
        $region52: #{bio_clinical_bert_ft_forward.1} parent=31 // pred_fallthru
          _
        // Predicated region
        $region53: #{bio_clinical_bert_ft_forward.1} parent=31 // pred_check
          %p617 = pneg %p261
        $region54: #{bio_clinical_bert_ft_forward.1} parent=31 // pred_check_branch
          %619 = sbr.rel (%p617) target = $region56
        $region55: #{bio_clinical_bert_ft_forward.1} parent=31 // pred_region
          %p620 = scmp.lt.s32.totalorder %s27, 1
          %s621 = scalar_select %p620, %s27, 1
          %s622 = smul.addr %s621, 2
          %s623 = scalar_lea.vmem %s9, %s622
        $region56: #{bio_clinical_bert_ft_forward.1} parent=31 // pred_fallthru
          _
        // Predicated region
        $region57: #{bio_clinical_bert_ft_forward.1} parent=31 // pred_check
          %p624 = pneg %p287
        $region58: #{bio_clinical_bert_ft_forward.1} parent=31 // pred_check_branch
          %626 = sbr.rel (%p624) target = $region60
        $region59: #{bio_clinical_bert_ft_forward.1} parent=31 // pred_region
          %p627 = scmp.lt.s32.totalorder %s27, 1
          %s628 = scalar_select %p627, %s27, 1
          %s629 = smul.addr %s628, 4
          %s630 = smul.addr %s629, 4
          %s631 = scalar_lea.vmem %s10, %s630
        $region60: #{bio_clinical_bert_ft_forward.1} parent=31 // pred_fallthru
          _
        // Predicated region
        $region61: #{bio_clinical_bert_ft_forward.1} parent=31 // pred_check
          %p632 = pneg %p313
        $region62: #{bio_clinical_bert_ft_forward.1} parent=31 // pred_check_branch
          %634 = sbr.rel (%p632) target = $region64
        $region63: #{bio_clinical_bert_ft_forward.1} parent=31 // pred_region
          %p635 = scmp.lt.s32.totalorder %s27, 1
          %s636 = scalar_select %p635, %s27, 1
          %s637 = scalar_lea.vmem %s11, %s636
        $region64: #{bio_clinical_bert_ft_forward.1} parent=31 // pred_fallthru
          _
        // Predicated region
        $region65: #{bio_clinical_bert_ft_forward.1} parent=31 // pred_check
          %p638 = pneg %p339
        $region66: #{bio_clinical_bert_ft_forward.1} parent=31 // pred_check_branch
          %640 = sbr.rel (%p638) target = $region68
        $region67: #{bio_clinical_bert_ft_forward.1} parent=31 // pred_region
          %p641 = scmp.lt.s32.totalorder %s27, 1
          %s642 = scalar_select %p641, %s27, 1
          %s643 = scalar_lea.vmem %s12, %s642
        $region68: #{bio_clinical_bert_ft_forward.1} parent=31 // pred_fallthru
          _
        // Predicated region
        $region69: #{bio_clinical_bert_ft_forward.1} parent=31 // pred_check
          %p644 = pneg %p365
        $region70: #{bio_clinical_bert_ft_forward.1} parent=31 // pred_check_branch
          %646 = sbr.rel (%p644) target = $region72
        $region71: #{bio_clinical_bert_ft_forward.1} parent=31 // pred_region
          %p647 = scmp.lt.s32.totalorder %s27, 1
          %s648 = scalar_select %p647, %s27, 1
          %s649 = scalar_lea.vmem %s13, %s648
        $region72: #{bio_clinical_bert_ft_forward.1} parent=31 // pred_fallthru
          _
        // Predicated region
        $region73: #{bio_clinical_bert_ft_forward.1} parent=31 // pred_check
          %p650 = pneg %p391
        $region74: #{bio_clinical_bert_ft_forward.1} parent=31 // pred_check_branch
          %652 = sbr.rel (%p650) target = $region76
        $region75: #{bio_clinical_bert_ft_forward.1} parent=31 // pred_region
          %p653 = scmp.lt.s32.totalorder %s27, 1
          %s654 = scalar_select %p653, %s27, 1
          %s655 = smul.addr %s654, 4
          %s656 = smul.addr %s655, 4
          %s657 = scalar_lea.vmem %s14, %s656
        $region76: #{bio_clinical_bert_ft_forward.1} parent=31 // pred_fallthru
          _
        // Predicated region
        $region77: #{bio_clinical_bert_ft_forward.1} parent=31 // pred_check
          %p658 = pneg %p417
        $region78: #{bio_clinical_bert_ft_forward.1} parent=31 // pred_check_branch
          %660 = sbr.rel (%p658) target = $region80
        $region79: #{bio_clinical_bert_ft_forward.1} parent=31 // pred_region
          %p661 = scmp.lt.s32.totalorder %s27, 1
          %s662 = scalar_select %p661, %s27, 1
          %s663 = scalar_lea.vmem %s15, %s662
        $region80: #{bio_clinical_bert_ft_forward.1} parent=31 // pred_fallthru
          _
        // Predicated region
        $region81: #{bio_clinical_bert_ft_forward.1} parent=31 // pred_check
          %p664 = pneg %p443
        $region82: #{bio_clinical_bert_ft_forward.1} parent=31 // pred_check_branch
          %666 = sbr.rel (%p664) target = $region84
        $region83: #{bio_clinical_bert_ft_forward.1} parent=31 // pred_region
          %p667 = scmp.lt.s32.totalorder %s27, 1
          %s668 = scalar_select %p667, %s27, 1
          %s669 = smul.addr %s668, 8
          %s670 = smul.addr %s669, 4
          %s671 = scalar_lea.vmem %s16, %s670
        $region84: #{bio_clinical_bert_ft_forward.1} parent=31 // pred_fallthru
          _
        // Predicated region
        $region85: #{bio_clinical_bert_ft_forward.1} parent=31 // pred_check
          %p672 = pneg %p469
        $region86: #{bio_clinical_bert_ft_forward.1} parent=31 // pred_check_branch
          %674 = sbr.rel (%p672) target = $region88
        $region87: #{bio_clinical_bert_ft_forward.1} parent=31 // pred_region
          %p675 = scmp.lt.s32.totalorder %s27, 1
          %s676 = scalar_select %p675, %s27, 1
          %s677 = scalar_lea.vmem %s17, %s676
        $region88: #{bio_clinical_bert_ft_forward.1} parent=31 // pred_fallthru
          _
        // Predicated region
        $region89: #{bio_clinical_bert_ft_forward.1} parent=31 // pred_check
          %p678 = pneg %p495
        $region90: #{bio_clinical_bert_ft_forward.1} parent=31 // pred_check_branch
          %680 = sbr.rel (%p678) target = $region92
        $region91: #{bio_clinical_bert_ft_forward.1} parent=31 // pred_region
          %p681 = scmp.lt.s32.totalorder %s27, 1
          %s682 = scalar_select %p681, %s27, 1
          %s683 = scalar_lea.vmem %s18, %s682
        $region92: #{bio_clinical_bert_ft_forward.1} parent=31 // pred_fallthru
          _
        // Predicated region
        $region93: #{bio_clinical_bert_ft_forward.1} parent=31 // pred_check
          %p684 = pneg %p521
        $region94: #{bio_clinical_bert_ft_forward.1} parent=31 // pred_check_branch
          %686 = sbr.rel (%p684) target = $region96
        $region95: #{bio_clinical_bert_ft_forward.1} parent=31 // pred_region
          %p687 = scmp.lt.s32.totalorder %s27, 1
          %s688 = scalar_select %p687, %s27, 1
          %s689 = scalar_lea.vmem %s19, %s688
        $region96: #{bio_clinical_bert_ft_forward.1} parent=31 // pred_fallthru
          _
      $region32: #{bio_clinical_bert_ft_forward.1} parent=5 // pred_fallthru
        _
      %p690 = scmp.le.s32.totalorder 1, %s27
      %p691 = scmp.lt.s32.totalorder %s27, 3
      %p692 = pnand %p690, %p691
      %p693 = pneg %p692
      // Predicated region
      $region97: #{bio_clinical_bert_ft_forward.1} parent=5 // pred_check
        _
      $region98: #{bio_clinical_bert_ft_forward.1} parent=5 // pred_check_branch
        %695 = sbr.rel (%p692) target = $region100
      $region99: #{bio_clinical_bert_ft_forward.1} parent=5 // pred_region
        %s696 = ssub.s32 %s27, 1
        %p697 = pneg %p48
        %p698 = pneg %p45
        %p699 = pneg %p69
        %p700 = pneg %p66
        %p701 = pneg %p90
        %p702 = pneg %p87
        %p703 = pneg %p111
        %p704 = pneg %p108
        %p705 = scmp.lt.s32.totalorder %s32, 1
        %s706 = scalar_select %p705, %s32, 1
        %s707 = smul.addr %s706, 8
        %s708 = smul.addr %s707, 4
        %s709 = scalar_lea.vmem %s4, %s708
        %p710 = pneg %p137
        %p711 = pneg %p134
        %p712 = scmp.lt.s32.totalorder %s32, 1
        %s713 = scalar_select %p712, %s32, 1
        %s714 = smul.addr %s713, 8
        %s715 = smul.addr %s714, 4
        %s716 = scalar_lea.vmem %s5, %s715
        %p717 = pneg %p163
        %p718 = pneg %p160
        %p719 = scmp.lt.s32.totalorder %s32, 1
        %s720 = scalar_select %p719, %s32, 1
        %s721 = smul.addr %s720, 8
        %s722 = smul.addr %s721, 4
        %s723 = scalar_lea.vmem %s6, %s722
        %p724 = pneg %p189
        %p725 = pneg %p186
        %p726 = scmp.lt.s32.totalorder %s32, 1
        %s727 = scalar_select %p726, %s32, 1
        %s728 = smul.addr %s727, 2
        %s729 = scalar_lea.vmem %s7, %s728
        %p730 = pneg %p215
        %p731 = pneg %p212
        %p732 = scmp.lt.s32.totalorder %s32, 1
        %s733 = scalar_select %p732, %s32, 1
        %s734 = smul.addr %s733, 2
        %s735 = scalar_lea.vmem %s8, %s734
        %p736 = pneg %p241
        %p737 = pneg %p238
        %p738 = scmp.lt.s32.totalorder %s32, 1
        %s739 = scalar_select %p738, %s32, 1
        %s740 = smul.addr %s739, 2
        %s741 = scalar_lea.vmem %s9, %s740
        %p742 = pneg %p267
        %p743 = pneg %p264
        %p744 = scmp.lt.s32.totalorder %s32, 1
        %s745 = scalar_select %p744, %s32, 1
        %s746 = smul.addr %s745, 4
        %s747 = smul.addr %s746, 4
        %s748 = scalar_lea.vmem %s10, %s747
        %p749 = pneg %p293
        %p750 = pneg %p290
        %p751 = scmp.lt.s32.totalorder %s32, 1
        %s752 = scalar_select %p751, %s32, 1
        %s753 = scalar_lea.vmem %s11, %s752
        %p754 = pneg %p319
        %p755 = pneg %p316
        %p756 = scmp.lt.s32.totalorder %s32, 1
        %s757 = scalar_select %p756, %s32, 1
        %s758 = scalar_lea.vmem %s12, %s757
        %p759 = pneg %p345
        %p760 = pneg %p342
        %p761 = scmp.lt.s32.totalorder %s32, 1
        %s762 = scalar_select %p761, %s32, 1
        %s763 = scalar_lea.vmem %s13, %s762
        %p764 = pneg %p371
        %p765 = pneg %p368
        %p766 = scmp.lt.s32.totalorder %s32, 1
        %s767 = scalar_select %p766, %s32, 1
        %s768 = smul.addr %s767, 4
        %s769 = smul.addr %s768, 4
        %s770 = scalar_lea.vmem %s14, %s769
        %p771 = pneg %p397
        %p772 = pneg %p394
        %p773 = scmp.lt.s32.totalorder %s32, 1
        %s774 = scalar_select %p773, %s32, 1
        %s775 = scalar_lea.vmem %s15, %s774
        %p776 = pneg %p423
        %p777 = pneg %p420
        %p778 = scmp.lt.s32.totalorder %s32, 1
        %s779 = scalar_select %p778, %s32, 1
        %s780 = smul.addr %s779, 8
        %s781 = smul.addr %s780, 4
        %s782 = scalar_lea.vmem %s16, %s781
        %p783 = pneg %p449
        %p784 = pneg %p446
        %p785 = scmp.lt.s32.totalorder %s32, 1
        %s786 = scalar_select %p785, %s32, 1
        %s787 = scalar_lea.vmem %s17, %s786
        %p788 = pneg %p475
        %p789 = pneg %p472
        %p790 = scmp.lt.s32.totalorder %s32, 1
        %s791 = scalar_select %p790, %s32, 1
        %s792 = scalar_lea.vmem %s18, %s791
        %p793 = pneg %p501
        %p794 = pneg %p498
        %p795 = scmp.lt.s32.totalorder %s32, 1
        %s796 = scalar_select %p795, %s32, 1
        %s797 = scalar_lea.vmem %s19, %s796
        %p798 = pneg %p527
        %p799 = pneg %p524
        %p800 = pneg %p548
        %p801 = pneg %p545
        %p802 = scmp.lt.s32.totalorder %s32, 1
        %s803 = scalar_select %p802, %s32, 1
        %s804 = smul.addr %s803, 8
        %s805 = smul.addr %s804, 4
        %s806 = scalar_lea.vmem %s4, %s805
        %p807 = scmp.lt.s32.totalorder %s32, 1
        %s808 = scalar_select %p807, %s32, 1
        %s809 = smul.addr %s808, 8
        %s810 = smul.addr %s809, 4
        %s811 = scalar_lea.vmem %s5, %s810
        %p812 = scmp.lt.s32.totalorder %s32, 1
        %s813 = scalar_select %p812, %s32, 1
        %s814 = smul.addr %s813, 8
        %s815 = smul.addr %s814, 4
        %s816 = scalar_lea.vmem %s6, %s815
        %p817 = scmp.lt.s32.totalorder %s32, 1
        %s818 = scalar_select %p817, %s32, 1
        %s819 = smul.addr %s818, 2
        %s820 = scalar_lea.vmem %s7, %s819
        %p821 = scmp.lt.s32.totalorder %s32, 1
        %s822 = scalar_select %p821, %s32, 1
        %s823 = smul.addr %s822, 2
        %s824 = scalar_lea.vmem %s8, %s823
        %p825 = scmp.lt.s32.totalorder %s32, 1
        %s826 = scalar_select %p825, %s32, 1
        %s827 = smul.addr %s826, 2
        %s828 = scalar_lea.vmem %s9, %s827
        %p829 = scmp.lt.s32.totalorder %s32, 1
        %s830 = scalar_select %p829, %s32, 1
        %s831 = smul.addr %s830, 4
        %s832 = smul.addr %s831, 4
        %s833 = scalar_lea.vmem %s10, %s832
        %p834 = scmp.lt.s32.totalorder %s32, 1
        %s835 = scalar_select %p834, %s32, 1
        %s836 = scalar_lea.vmem %s11, %s835
        %p837 = scmp.lt.s32.totalorder %s32, 1
        %s838 = scalar_select %p837, %s32, 1
        %s839 = scalar_lea.vmem %s12, %s838
        %p840 = scmp.lt.s32.totalorder %s32, 1
        %s841 = scalar_select %p840, %s32, 1
        %s842 = scalar_lea.vmem %s13, %s841
        %p843 = scmp.lt.s32.totalorder %s32, 1
        %s844 = scalar_select %p843, %s32, 1
        %s845 = smul.addr %s844, 4
        %s846 = smul.addr %s845, 4
        %s847 = scalar_lea.vmem %s14, %s846
        %p848 = scmp.lt.s32.totalorder %s32, 1
        %s849 = scalar_select %p848, %s32, 1
        %s850 = scalar_lea.vmem %s15, %s849
        %p851 = scmp.lt.s32.totalorder %s32, 1
        %s852 = scalar_select %p851, %s32, 1
        %s853 = smul.addr %s852, 8
        %s854 = smul.addr %s853, 4
        %s855 = scalar_lea.vmem %s16, %s854
        %p856 = scmp.lt.s32.totalorder %s32, 1
        %s857 = scalar_select %p856, %s32, 1
        %s858 = scalar_lea.vmem %s17, %s857
        %p859 = scmp.lt.s32.totalorder %s32, 1
        %s860 = scalar_select %p859, %s32, 1
        %s861 = scalar_lea.vmem %s18, %s860
        %p862 = scmp.lt.s32.totalorder %s32, 1
        %s863 = scalar_select %p862, %s32, 1
        %s864 = scalar_lea.vmem %s19, %s863
        %p866 = scmp.eq.s32.totalorder %s32, 0
        // Predicated region
        $region101: #{bio_clinical_bert_ft_forward.1} parent=99 // pred_check
          %p867 = pneg %p866
        $region102: #{bio_clinical_bert_ft_forward.1} parent=99 // pred_check_branch
          %869 = sbr.rel (%p867) target = $region104
        $region103: #{bio_clinical_bert_ft_forward.1} parent=99 // pred_region
          %v870 = vld [vmem:[%s0] sm:$0xff]
          %v871 = vld [vmem:[%s0 + $0x8] sm:$0xff]
          %v872 = vld [vmem:[%s2] sm:$0x1]
          %v873 = vld [vmem:[%s3] sm:$0x1]
          %vm874 = vcmask 261120
          %v875 = vsel %vm874, %v870, 0.0
          %876 = vadd.xlane.f32.xlu0 %v875
          %v877 = vpop.xlane.xlu0 %876
          %v878 = vsel %vm874, %v871, 0.0
          %879 = vadd.xlane.f32.xlu0 %v878
          %v880 = vpop.xlane.xlu0 %879
          %v881 = vrcp.pop 32.0
          %v882 = vmul.f32 %v877, %v881
          %v883 = vmul.f32 %v880, %v881
          %v884 = vsub.f32 %v870, %v882
          %v885 = vsub.f32 %v871, %v883
          %v886 = vmul.f32 %v884, %v884
          %v887 = vmul.f32 %v885, %v885
          %v888 = vsel %vm874, %v886, 0.0
          %889 = vadd.xlane.f32.xlu0 %v888
          %v890 = vpop.xlane.xlu0 %889
          %v891 = vsel %vm874, %v887, 0.0
          %892 = vadd.xlane.f32.xlu0 %v891
          %v893 = vpop.xlane.xlu0 %892
          %v894 = vmul.f32 %v890, %v881
          %v895 = vmul.f32 %v893, %v881
          %v896 = vadd.f32 %v894, 1e-12
          %v897 = vadd.f32 %v895, 1e-12
          %v898 = vrsqrt.pop %v896
          %v899 = vrsqrt.pop %v897
          %v900 = vmul.f32 %v884, %v898
          %v901 = vmul.f32 %v885, %v899
          %v903 = vlaneseq
          %v904 = vshrl.u32 %v903, 7
          %v905 = vsub.s32 0, %v904
          %v906 = vrot.slane %v872, %v905
          %v908 = vmul.f32 %v900, %v906
          %v909 = vmul.f32 %v901, %v906
          %v911 = vlaneseq
          %v912 = vshrl.u32 %v911, 7
          %v913 = vsub.s32 0, %v912
          %v914 = vrot.slane %v873, %v913
          %v916 = vadd.f32 %v908, %v914
          %v917 = vadd.f32 %v909, %v914
          %918 = vst.msk [vmem:[#allocation2] sm:$0xff] %vm874, %v916
          %919 = vst.msk [vmem:[#allocation2 + $0x8] sm:$0xff] %vm874, %v917
        $region104: #{bio_clinical_bert_ft_forward.1} parent=99 // pred_fallthru
          _
        %v920 = vld [vmem:[#allocation2] sm:$0xff]
        %v921 = vld [vmem:[#allocation2 + $0x8] sm:$0xff]
        %v922 = vpack.c.bf16 %v921, %v920
        %v923 = vld [vmem:[%s1] sm:$0x3]
        %v926 = vunpack.c.l.s4 1966171168
        %v927 = vunpack.c.0.s8 %v926
        %v928 = vlaneseq
        %v929 = vshrl.u32 %v928, 7
        %v930 = vsub.s32 %v927, %v929
        %v931 = vrot.slane %v923, %v930
        %v932 = vcombine.high %v931, %v931
        %v934 = vunpack.c.l.s4 1966171168
        %v935 = vunpack.c.0.s8 %v934
        %v936 = vlaneseq
        %v937 = vshrl.u32 %v936, 7
        %v938 = vsub.s32 %v935, %v937
        %v939 = vrot.slane %v931, %v938
        %v941 = vunpack.c.l.s4 1966171168
        %v942 = vunpack.c.0.s8 %v941
        %v943 = vlaneseq
        %v944 = vshrl.u32 %v943, 7
        %v945 = vsub.s32 %v942, %v944
        %v946 = vrot.slane %v932, %v945
        %v947 = vld [vmem:[%s806] sm:$0xf]
        %v948 = vld [vmem:[%s806 + $0x4] sm:$0xf]
        %v949 = vld [vmem:[%s806 + $0x8] sm:$0xf]
        %v950 = vld [vmem:[%s806 + $0xc] sm:$0xf]
        %v951 = vld [vmem:[%s820] sm:$0x1]
        %v953 = vlaneseq
        %v954 = vshrl.u32 %v953, 7
        %v955 = vsub.s32 0, %v954
        %v956 = vrot.slane %v951, %v955
        %v962 = vunpack.c.l.b16 %v947
        %v963 = vunpack.c.l.b16 %v948
        %v964 = vunpack.c.l.b16 %v949
        %v965 = vunpack.c.l.b16 %v950
        %v966 = vpack.c.b16 %v963, %v962
        %v967 = vpack.c.b16 %v965, %v964
        %vm970 = vcmask 261120
        %v972 = vsel %vm970, %v922, 0
        %974 = vmatprep.subr.bf16.mxu0 0
        %975 = vmatpush1.bf16.msra.mxu0 0
        %976 = vmatprep.subr.bf16.mxu0 0
        %977 = vmatpush1.bf16.msra.mxu0 0
        %978 = vmatprep.subr.bf16.mxu0 0
        %979 = vmatpush1.bf16.msra.mxu0 0
        %980 = vmatprep.subr.bf16.mxu0 0
        %981 = vmatpush1.bf16.msra.mxu0 0
        %982 = vmatprep.subr.bf16.mxu0 0
        %983 = vmatpush1.bf16.msra.mxu0 0
        %984 = vmatprep.subr.bf16.mxu0 0
        %985 = vmatpush1.bf16.msra.mxu0 0
        %986 = vmatprep.subr.bf16.mxu0 0
        %987 = vmatpush1.bf16.msra.mxu0 %v967
        %988 = vmatprep.subr.bf16.mxu0 0
        %989 = vmatpush1.bf16.msra.mxu0 %v966
        %990 = vmatprep.subr.bf16.mxu0 0
        %991 = vmatpush2.bf16.msra.mxu0 0
        %992 = vmatprep.subr.bf16.mxu0 0
        %993 = vmatpush2.bf16.msra.mxu0 0
        %994 = vmatprep.subr.bf16.mxu0 0
        %995 = vmatpush2.bf16.msra.mxu0 0
        %996 = vmatprep.subr.bf16.mxu0 0
        %997 = vmatpush2.bf16.msra.mxu0 0
        %998 = vmatprep.subr.bf16.mxu0 0
        %999 = vmatpush2.bf16.msra.mxu0 0
        %1000 = vmatprep.subr.bf16.mxu0 0
        %1001 = vmatpush2.bf16.msra.mxu0 0
        %1002 = vmatprep.subr.bf16.mxu0 0
        %1003 = vmatpush2.bf16.msra.mxu0 0
        %1004 = vmatprep.subr.bf16.mxu0 0
        %1005 = vmatpush2.bf16.msra.mxu0 0
        %1006 = vmatprep.mubr.bf16.mxu0 0
        %1007 = vmatmul.mubr.bf16.gmra.mxu0 %v972
        %v1008 = vpop.f32.mrf.mxu0
        %v1009 = vadd.f32 %v956, %v1008
        %v1010 = vpop.f32.mrf.mxu0
        %v1011 = vpop.f32.mrf.mxu0
        %v1012 = vadd.f32 %v956, %v1011
        %v1013 = vpop.f32.mrf.mxu0
        %1014 = vdwg.mxu0
        %v1015 = vld [vmem:[%s811] sm:$0xf]
        %v1016 = vld [vmem:[%s811 + $0x4] sm:$0xf]
        %v1017 = vld [vmem:[%s811 + $0x8] sm:$0xf]
        %v1018 = vld [vmem:[%s811 + $0xc] sm:$0xf]
        %v1019 = vld [vmem:[%s824] sm:$0x1]
        %v1021 = vlaneseq
        %v1022 = vshrl.u32 %v1021, 7
        %v1023 = vsub.s32 0, %v1022
        %v1024 = vrot.slane %v1019, %v1023
        %v1030 = vunpack.c.l.b16 %v1015
        %v1031 = vunpack.c.l.b16 %v1016
        %v1032 = vunpack.c.l.b16 %v1017
        %v1033 = vunpack.c.l.b16 %v1018
        %v1034 = vpack.c.b16 %v1031, %v1030
        %v1035 = vpack.c.b16 %v1033, %v1032
        %1038 = vmatprep.subr.bf16.mxu0 0
        %1039 = vmatpush1.bf16.msra.mxu0 0
        %1040 = vmatprep.subr.bf16.mxu0 0
        %1041 = vmatpush1.bf16.msra.mxu0 0
        %1042 = vmatprep.subr.bf16.mxu0 0
        %1043 = vmatpush1.bf16.msra.mxu0 0
        %1044 = vmatprep.subr.bf16.mxu0 0
        %1045 = vmatpush1.bf16.msra.mxu0 0
        %1046 = vmatprep.subr.bf16.mxu0 0
        %1047 = vmatpush1.bf16.msra.mxu0 0
        %1048 = vmatprep.subr.bf16.mxu0 0
        %1049 = vmatpush1.bf16.msra.mxu0 0
        %1050 = vmatprep.subr.bf16.mxu0 0
        %1051 = vmatpush1.bf16.msra.mxu0 %v1035
        %1052 = vmatprep.subr.bf16.mxu0 0
        %1053 = vmatpush1.bf16.msra.mxu0 %v1034
        %1054 = vmatprep.subr.bf16.mxu0 0
        %1055 = vmatpush2.bf16.msra.mxu0 0
        %1056 = vmatprep.subr.bf16.mxu0 0
        %1057 = vmatpush2.bf16.msra.mxu0 0
        %1058 = vmatprep.subr.bf16.mxu0 0
        %1059 = vmatpush2.bf16.msra.mxu0 0
        %1060 = vmatprep.subr.bf16.mxu0 0
        %1061 = vmatpush2.bf16.msra.mxu0 0
        %1062 = vmatprep.subr.bf16.mxu0 0
        %1063 = vmatpush2.bf16.msra.mxu0 0
        %1064 = vmatprep.subr.bf16.mxu0 0
        %1065 = vmatpush2.bf16.msra.mxu0 0
        %1066 = vmatprep.subr.bf16.mxu0 0
        %1067 = vmatpush2.bf16.msra.mxu0 0
        %1068 = vmatprep.subr.bf16.mxu0 0
        %1069 = vmatpush2.bf16.msra.mxu0 0
        %1070 = vmatprep.mubr.bf16.mxu0 0
        %1071 = vmatmul.mubr.bf16.gmra.mxu0 %v972
        %v1072 = vpop.f32.mrf.mxu0
        %v1073 = vadd.f32 %v1024, %v1072
        %v1074 = vpop.f32.mrf.mxu0
        %v1075 = vpop.f32.mrf.mxu0
        %v1076 = vadd.f32 %v1024, %v1075
        %v1077 = vpop.f32.mrf.mxu0
        %1078 = vdwg.mxu0
        %v1079 = vld [vmem:[%s816] sm:$0xf]
        %v1080 = vld [vmem:[%s816 + $0x4] sm:$0xf]
        %v1081 = vld [vmem:[%s816 + $0x8] sm:$0xf]
        %v1082 = vld [vmem:[%s816 + $0xc] sm:$0xf]
        %v1083 = vld [vmem:[%s828] sm:$0x1]
        %v1085 = vlaneseq
        %v1086 = vshrl.u32 %v1085, 7
        %v1087 = vsub.s32 0, %v1086
        %v1088 = vrot.slane %v1083, %v1087
        %v1094 = vunpack.c.l.b16 %v1079
        %v1095 = vunpack.c.l.b16 %v1080
        %v1096 = vunpack.c.l.b16 %v1081
        %v1097 = vunpack.c.l.b16 %v1082
        %v1098 = vpack.c.b16 %v1095, %v1094
        %v1099 = vpack.c.b16 %v1097, %v1096
        %1102 = vmatprep.subr.bf16.mxu0 0
        %1103 = vmatpush1.bf16.msra.mxu0 0
        %1104 = vmatprep.subr.bf16.mxu0 0
        %1105 = vmatpush1.bf16.msra.mxu0 0
        %1106 = vmatprep.subr.bf16.mxu0 0
        %1107 = vmatpush1.bf16.msra.mxu0 0
        %1108 = vmatprep.subr.bf16.mxu0 0
        %1109 = vmatpush1.bf16.msra.mxu0 0
        %1110 = vmatprep.subr.bf16.mxu0 0
        %1111 = vmatpush1.bf16.msra.mxu0 0
        %1112 = vmatprep.subr.bf16.mxu0 0
        %1113 = vmatpush1.bf16.msra.mxu0 0
        %1114 = vmatprep.subr.bf16.mxu0 0
        %1115 = vmatpush1.bf16.msra.mxu0 %v1099
        %1116 = vmatprep.subr.bf16.mxu0 0
        %1117 = vmatpush1.bf16.msra.mxu0 %v1098
        %1118 = vmatprep.subr.bf16.mxu0 0
        %1119 = vmatpush2.bf16.msra.mxu0 0
        %1120 = vmatprep.subr.bf16.mxu0 0
        %1121 = vmatpush2.bf16.msra.mxu0 0
        %1122 = vmatprep.subr.bf16.mxu0 0
        %1123 = vmatpush2.bf16.msra.mxu0 0
        %1124 = vmatprep.subr.bf16.mxu0 0
        %1125 = vmatpush2.bf16.msra.mxu0 0
        %1126 = vmatprep.subr.bf16.mxu0 0
        %1127 = vmatpush2.bf16.msra.mxu0 0
        %1128 = vmatprep.subr.bf16.mxu0 0
        %1129 = vmatpush2.bf16.msra.mxu0 0
        %1130 = vmatprep.subr.bf16.mxu0 0
        %1131 = vmatpush2.bf16.msra.mxu0 0
        %1132 = vmatprep.subr.bf16.mxu0 0
        %1133 = vmatpush2.bf16.msra.mxu0 0
        %1134 = vmatprep.mubr.bf16.mxu0 0
        %1135 = vmatmul.mubr.bf16.gmra.mxu0 %v972
        %v1136 = vpop.f32.mrf.mxu0
        %v1137 = vadd.f32 %v1088, %v1136
        %v1138 = vpop.f32.mrf.mxu0
        %v1139 = vpop.f32.mrf.mxu0
        %v1140 = vadd.f32 %v1088, %v1139
        %v1141 = vpop.f32.mrf.mxu0
        %1142 = vdwg.mxu0
        %v1143 = vpack.c.bf16 %v1009, %v1009
        %v1144 = vpack.c.bf16 %v1012, %v1012
        %v1145 = vpack.c.bf16 %v1073, %v1073
        %v1146 = vpack.c.bf16 %v1076, %v1076
        %v1147 = vlaneseq
        %v1148 = vshrl.u32 %v1147, 7
        %v1149 = vsub.s32 0, %v1148
        %v1150 = vrot.slane %v939, %v1149
        %v1151 = vlaneseq
        %v1152 = vshrl.u32 %v1151, 7
        %v1153 = vsub.s32 0, %v1152
        %v1154 = vrot.slane %v946, %v1153
        %vm1157 = vcmask 130048
        %v1159 = vsel %vm1157, %v1143, 0
        %v1162 = vsel %vm1157, %v1145, 0
        %1164 = vmatprep.subr.bf16.mxu0 0
        %1165 = vmatpush1.bf16.xpose.msra.mxu0 0
        %1166 = vmatprep.subr.bf16.mxu0 0
        %1167 = vmatpush1.bf16.xpose.msra.mxu0 0
        %1168 = vmatprep.subr.bf16.mxu0 0
        %1169 = vmatpush1.bf16.xpose.msra.mxu0 0
        %1170 = vmatprep.subr.bf16.mxu0 0
        %1171 = vmatpush1.bf16.xpose.msra.mxu0 0
        %1172 = vmatprep.subr.bf16.mxu0 0
        %1173 = vmatpush1.bf16.xpose.msra.mxu0 0
        %1174 = vmatprep.subr.bf16.mxu0 0
        %1175 = vmatpush1.bf16.xpose.msra.mxu0 0
        %1176 = vmatprep.subr.bf16.mxu0 0
        %1177 = vmatpush1.bf16.xpose.msra.mxu0 0
        %1178 = vmatprep.subr.bf16.mxu0 0
        %1179 = vmatpush1.bf16.xpose.msra.mxu0 %v1162
        %1180 = vmatprep.subr.bf16.mxu0 0
        %1181 = vmatpush2.bf16.xpose.msra.mxu0 0
        %1182 = vmatprep.subr.bf16.mxu0 0
        %1183 = vmatpush2.bf16.xpose.msra.mxu0 0
        %1184 = vmatprep.subr.bf16.mxu0 0
        %1185 = vmatpush2.bf16.xpose.msra.mxu0 0
        %1186 = vmatprep.subr.bf16.mxu0 0
        %1187 = vmatpush2.bf16.xpose.msra.mxu0 0
        %1188 = vmatprep.subr.bf16.mxu0 0
        %1189 = vmatpush2.bf16.xpose.msra.mxu0 0
        %1190 = vmatprep.subr.bf16.mxu0 0
        %1191 = vmatpush2.bf16.xpose.msra.mxu0 0
        %1192 = vmatprep.subr.bf16.mxu0 0
        %1193 = vmatpush2.bf16.xpose.msra.mxu0 0
        %1194 = vmatprep.subr.bf16.mxu0 0
        %1195 = vmatpush2.bf16.xpose.msra.mxu0 0
        %1196 = vmatprep.mubr.bf16.mxu0 0
        %1197 = vmatmul.mubr.bf16.gmra.mxu0 %v1159
        %v1198 = vpop.f32.mrf.mxu0
        %v1199 = vadd.f32 %v1150, %v1198
        %v1200 = vpop.f32.mrf.mxu0
        %v1201 = vpop.f32.mrf.mxu0
        %v1202 = vpop.f32.mrf.mxu0
        %1203 = vdwg.mxu0
        %v1205 = vsel %vm1157, %v1144, 0
        %v1208 = vsel %vm1157, %v1146, 0
        %1210 = vmatprep.subr.bf16.mxu0 0
        %1211 = vmatpush1.bf16.xpose.msra.mxu0 0
        %1212 = vmatprep.subr.bf16.mxu0 0
        %1213 = vmatpush1.bf16.xpose.msra.mxu0 0
        %1214 = vmatprep.subr.bf16.mxu0 0
        %1215 = vmatpush1.bf16.xpose.msra.mxu0 0
        %1216 = vmatprep.subr.bf16.mxu0 0
        %1217 = vmatpush1.bf16.xpose.msra.mxu0 0
        %1218 = vmatprep.subr.bf16.mxu0 0
        %1219 = vmatpush1.bf16.xpose.msra.mxu0 0
        %1220 = vmatprep.subr.bf16.mxu0 0
        %1221 = vmatpush1.bf16.xpose.msra.mxu0 0
        %1222 = vmatprep.subr.bf16.mxu0 0
        %1223 = vmatpush1.bf16.xpose.msra.mxu0 0
        %1224 = vmatprep.subr.bf16.mxu0 0
        %1225 = vmatpush1.bf16.xpose.msra.mxu0 %v1208
        %1226 = vmatprep.subr.bf16.mxu0 0
        %1227 = vmatpush2.bf16.xpose.msra.mxu0 0
        %1228 = vmatprep.subr.bf16.mxu0 0
        %1229 = vmatpush2.bf16.xpose.msra.mxu0 0
        %1230 = vmatprep.subr.bf16.mxu0 0
        %1231 = vmatpush2.bf16.xpose.msra.mxu0 0
        %1232 = vmatprep.subr.bf16.mxu0 0
        %1233 = vmatpush2.bf16.xpose.msra.mxu0 0
        %1234 = vmatprep.subr.bf16.mxu0 0
        %1235 = vmatpush2.bf16.xpose.msra.mxu0 0
        %1236 = vmatprep.subr.bf16.mxu0 0
        %1237 = vmatpush2.bf16.xpose.msra.mxu0 0
        %1238 = vmatprep.subr.bf16.mxu0 0
        %1239 = vmatpush2.bf16.xpose.msra.mxu0 0
        %1240 = vmatprep.subr.bf16.mxu0 0
        %1241 = vmatpush2.bf16.xpose.msra.mxu0 0
        %1242 = vmatprep.mubr.bf16.mxu0 0
        %1243 = vmatmul.mubr.bf16.gmra.mxu0 %v1205
        %v1244 = vpop.f32.mrf.mxu0
        %v1245 = vadd.f32 %v1154, %v1244
        %v1246 = vpop.f32.mrf.mxu0
        %v1247 = vpop.f32.mrf.mxu0
        %v1248 = vpop.f32.mrf.mxu0
        %1249 = vdwg.mxu0
        %vm1250 = vcmask 64512
        %v1251 = vsel %vm1250, %v1199, -inf
        %1252 = vmax.xlane.f32.xlu0 %v1251
        %v1253 = vpop.xlane.xlu0 %1252
        %v1254 = vsel %vm1250, %v1245, -inf
        %1255 = vmax.xlane.f32.xlu0 %v1254
        %v1256 = vpop.xlane.xlu0 %1255
        %v1257 = vsub.f32 %v1199, %v1253
        %v1258 = vsub.f32 %v1245, %v1256
        %v1259 = vmul.f32 %v1257, 1.442695
        %v1260 = vpow.pop %v1259
        %v1261 = vmul.f32 %v1258, 1.442695
        %v1262 = vpow.pop %v1261
        %v1263 = vsel %vm1250, %v1260, 0.0
        %1264 = vadd.xlane.f32.xlu0 %v1263
        %v1265 = vpop.xlane.xlu0 %1264
        %v1266 = vsel %vm1250, %v1262, 0.0
        %1267 = vadd.xlane.f32.xlu0 %v1266
        %v1268 = vpop.xlane.xlu0 %1267
        %v1269 = vrcp.pop %v1265
        %v1270 = vmul.f32 %v1260, %v1269
        %v1271 = vrcp.pop %v1268
        %v1272 = vmul.f32 %v1262, %v1271
        %v1273 = vpack.c.bf16 %v1270, %v1270
        %v1274 = vpack.c.bf16 %v1272, %v1272
        %v1275 = vpack.c.bf16 %v1137, %v1137
        %v1276 = vpack.c.bf16 %v1140, %v1140
        %v1278 = vsel %vm1250, %v1273, 0
        %vm1280 = vcmask 1043456
        %v1282 = vsel %vm1280, %v1275, 0
        %1284 = vmatprep.subr.bf16.mxu0 0
        %1285 = vmatpush1.bf16.msra.mxu0 0
        %1286 = vmatprep.subr.bf16.mxu0 0
        %1287 = vmatpush1.bf16.msra.mxu0 0
        %1288 = vmatprep.subr.bf16.mxu0 0
        %1289 = vmatpush1.bf16.msra.mxu0 0
        %1290 = vmatprep.subr.bf16.mxu0 0
        %1291 = vmatpush1.bf16.msra.mxu0 0
        %1292 = vmatprep.subr.bf16.mxu0 0
        %1293 = vmatpush1.bf16.msra.mxu0 0
        %1294 = vmatprep.subr.bf16.mxu0 0
        %1295 = vmatpush1.bf16.msra.mxu0 0
        %1296 = vmatprep.subr.bf16.mxu0 0
        %1297 = vmatpush1.bf16.msra.mxu0 0
        %1298 = vmatprep.subr.bf16.mxu0 0
        %1299 = vmatpush1.bf16.msra.mxu0 %v1282
        %1300 = vmatprep.subr.bf16.mxu0 0
        %1301 = vmatpush2.bf16.msra.mxu0 0
        %1302 = vmatprep.subr.bf16.mxu0 0
        %1303 = vmatpush2.bf16.msra.mxu0 0
        %1304 = vmatprep.subr.bf16.mxu0 0
        %1305 = vmatpush2.bf16.msra.mxu0 0
        %1306 = vmatprep.subr.bf16.mxu0 0
        %1307 = vmatpush2.bf16.msra.mxu0 0
        %1308 = vmatprep.subr.bf16.mxu0 0
        %1309 = vmatpush2.bf16.msra.mxu0 0
        %1310 = vmatprep.subr.bf16.mxu0 0
        %1311 = vmatpush2.bf16.msra.mxu0 0
        %1312 = vmatprep.subr.bf16.mxu0 0
        %1313 = vmatpush2.bf16.msra.mxu0 0
        %1314 = vmatprep.subr.bf16.mxu0 0
        %1315 = vmatpush2.bf16.msra.mxu0 0
        %1316 = vmatprep.mubr.bf16.mxu0 0
        %1317 = vmatmul.mubr.bf16.gmra.mxu0 %v1278
        %v1318 = vpop.f32.mrf.mxu0
        %v1319 = vadd.f32 0.0, %v1318
        %v1320 = vpop.f32.mrf.mxu0
        %v1321 = vpop.f32.mrf.mxu0
        %v1322 = vpop.f32.mrf.mxu0
        %1323 = vdwg.mxu0
        %v1325 = vsel %vm1250, %v1274, 0
        %v1328 = vsel %vm1280, %v1276, 0
        %1330 = vmatprep.subr.bf16.mxu0 0
        %1331 = vmatpush1.bf16.msra.mxu0 0
        %1332 = vmatprep.subr.bf16.mxu0 0
        %1333 = vmatpush1.bf16.msra.mxu0 0
        %1334 = vmatprep.subr.bf16.mxu0 0
        %1335 = vmatpush1.bf16.msra.mxu0 0
        %1336 = vmatprep.subr.bf16.mxu0 0
        %1337 = vmatpush1.bf16.msra.mxu0 0
        %1338 = vmatprep.subr.bf16.mxu0 0
        %1339 = vmatpush1.bf16.msra.mxu0 0
        %1340 = vmatprep.subr.bf16.mxu0 0
        %1341 = vmatpush1.bf16.msra.mxu0 0
        %1342 = vmatprep.subr.bf16.mxu0 0
        %1343 = vmatpush1.bf16.msra.mxu0 0
        %1344 = vmatprep.subr.bf16.mxu0 0
        %1345 = vmatpush1.bf16.msra.mxu0 %v1328
        %1346 = vmatprep.subr.bf16.mxu0 0
        %1347 = vmatpush2.bf16.msra.mxu0 0
        %1348 = vmatprep.subr.bf16.mxu0 0
        %1349 = vmatpush2.bf16.msra.mxu0 0
        %1350 = vmatprep.subr.bf16.mxu0 0
        %1351 = vmatpush2.bf16.msra.mxu0 0
        %1352 = vmatprep.subr.bf16.mxu0 0
        %1353 = vmatpush2.bf16.msra.mxu0 0
        %1354 = vmatprep.subr.bf16.mxu0 0
        %1355 = vmatpush2.bf16.msra.mxu0 0
        %1356 = vmatprep.subr.bf16.mxu0 0
        %1357 = vmatpush2.bf16.msra.mxu0 0
        %1358 = vmatprep.subr.bf16.mxu0 0
        %1359 = vmatpush2.bf16.msra.mxu0 0
        %1360 = vmatprep.subr.bf16.mxu0 0
        %1361 = vmatpush2.bf16.msra.mxu0 0
        %1362 = vmatprep.mubr.bf16.mxu0 0
        %1363 = vmatmul.mubr.bf16.gmra.mxu0 %v1325
        %v1364 = vpop.f32.mrf.mxu0
        %v1365 = vadd.f32 0.0, %v1364
        %v1366 = vpop.f32.mrf.mxu0
        %v1367 = vpop.f32.mrf.mxu0
        %v1368 = vpop.f32.mrf.mxu0
        %1369 = vdwg.mxu0
        %v1370 = vpack.c.bf16 %v1365, %v1319
        %v1371 = vld [vmem:[%s833] sm:$0xf]
        %v1372 = vld [vmem:[%s833 + $0x4] sm:$0xf]
        %s1373 = scalar_lea.vmem %s806, 16
        %v1374 = vld [vmem:[%s1373] sm:$0xf]
        %v1375 = vld [vmem:[%s1373 + $0x4] sm:$0xf]
        %v1376 = vld [vmem:[%s1373 + $0x8] sm:$0xf]
        %v1377 = vld [vmem:[%s1373 + $0xc] sm:$0xf]
        %s1378 = scalar_lea.vmem %s820, 1
        %v1379 = vld [vmem:[%s1378] sm:$0x1]
        %v1381 = vlaneseq
        %v1382 = vshrl.u32 %v1381, 7
        %v1383 = vsub.s32 0, %v1382
        %v1384 = vrot.slane %v1379, %v1383
        %v1390 = vunpack.c.l.b16 %v1374
        %v1391 = vunpack.c.l.b16 %v1375
        %v1392 = vunpack.c.l.b16 %v1376
        %v1393 = vunpack.c.l.b16 %v1377
        %v1394 = vpack.c.b16 %v1391, %v1390
        %v1395 = vpack.c.b16 %v1393, %v1392
        %1398 = vmatprep.subr.bf16.mxu0 0
        %1399 = vmatpush1.bf16.msra.mxu0 0
        %1400 = vmatprep.subr.bf16.mxu0 0
        %1401 = vmatpush1.bf16.msra.mxu0 0
        %1402 = vmatprep.subr.bf16.mxu0 0
        %1403 = vmatpush1.bf16.msra.mxu0 0
        %1404 = vmatprep.subr.bf16.mxu0 0
        %1405 = vmatpush1.bf16.msra.mxu0 0
        %1406 = vmatprep.subr.bf16.mxu0 0
        %1407 = vmatpush1.bf16.msra.mxu0 0
        %1408 = vmatprep.subr.bf16.mxu0 0
        %1409 = vmatpush1.bf16.msra.mxu0 0
        %1410 = vmatprep.subr.bf16.mxu0 0
        %1411 = vmatpush1.bf16.msra.mxu0 %v1395
        %1412 = vmatprep.subr.bf16.mxu0 0
        %1413 = vmatpush1.bf16.msra.mxu0 %v1394
        %1414 = vmatprep.subr.bf16.mxu0 0
        %1415 = vmatpush2.bf16.msra.mxu0 0
        %1416 = vmatprep.subr.bf16.mxu0 0
        %1417 = vmatpush2.bf16.msra.mxu0 0
        %1418 = vmatprep.subr.bf16.mxu0 0
        %1419 = vmatpush2.bf16.msra.mxu0 0
        %1420 = vmatprep.subr.bf16.mxu0 0
        %1421 = vmatpush2.bf16.msra.mxu0 0
        %1422 = vmatprep.subr.bf16.mxu0 0
        %1423 = vmatpush2.bf16.msra.mxu0 0
        %1424 = vmatprep.subr.bf16.mxu0 0
        %1425 = vmatpush2.bf16.msra.mxu0 0
        %1426 = vmatprep.subr.bf16.mxu0 0
        %1427 = vmatpush2.bf16.msra.mxu0 0
        %1428 = vmatprep.subr.bf16.mxu0 0
        %1429 = vmatpush2.bf16.msra.mxu0 0
        %1430 = vmatprep.mubr.bf16.mxu0 0
        %1431 = vmatmul.mubr.bf16.gmra.mxu0 %v972
        %v1432 = vpop.f32.mrf.mxu0
        %v1433 = vadd.f32 %v1384, %v1432
        %v1434 = vpop.f32.mrf.mxu0
        %v1435 = vpop.f32.mrf.mxu0
        %v1436 = vadd.f32 %v1384, %v1435
        %v1437 = vpop.f32.mrf.mxu0
        %1438 = vdwg.mxu0
        %s1439 = scalar_lea.vmem %s811, 16
        %v1440 = vld [vmem:[%s1439] sm:$0xf]
        %v1441 = vld [vmem:[%s1439 + $0x4] sm:$0xf]
        %v1442 = vld [vmem:[%s1439 + $0x8] sm:$0xf]
        %v1443 = vld [vmem:[%s1439 + $0xc] sm:$0xf]
        %s1444 = scalar_lea.vmem %s824, 1
        %v1445 = vld [vmem:[%s1444] sm:$0x1]
        %v1447 = vlaneseq
        %v1448 = vshrl.u32 %v1447, 7
        %v1449 = vsub.s32 0, %v1448
        %v1450 = vrot.slane %v1445, %v1449
        %v1456 = vunpack.c.l.b16 %v1440
        %v1457 = vunpack.c.l.b16 %v1441
        %v1458 = vunpack.c.l.b16 %v1442
        %v1459 = vunpack.c.l.b16 %v1443
        %v1460 = vpack.c.b16 %v1457, %v1456
        %v1461 = vpack.c.b16 %v1459, %v1458
        %1464 = vmatprep.subr.bf16.mxu0 0
        %1465 = vmatpush1.bf16.msra.mxu0 0
        %1466 = vmatprep.subr.bf16.mxu0 0
        %1467 = vmatpush1.bf16.msra.mxu0 0
        %1468 = vmatprep.subr.bf16.mxu0 0
        %1469 = vmatpush1.bf16.msra.mxu0 0
        %1470 = vmatprep.subr.bf16.mxu0 0
        %1471 = vmatpush1.bf16.msra.mxu0 0
        %1472 = vmatprep.subr.bf16.mxu0 0
        %1473 = vmatpush1.bf16.msra.mxu0 0
        %1474 = vmatprep.subr.bf16.mxu0 0
        %1475 = vmatpush1.bf16.msra.mxu0 0
        %1476 = vmatprep.subr.bf16.mxu0 0
        %1477 = vmatpush1.bf16.msra.mxu0 %v1461
        %1478 = vmatprep.subr.bf16.mxu0 0
        %1479 = vmatpush1.bf16.msra.mxu0 %v1460
        %1480 = vmatprep.subr.bf16.mxu0 0
        %1481 = vmatpush2.bf16.msra.mxu0 0
        %1482 = vmatprep.subr.bf16.mxu0 0
        %1483 = vmatpush2.bf16.msra.mxu0 0
        %1484 = vmatprep.subr.bf16.mxu0 0
        %1485 = vmatpush2.bf16.msra.mxu0 0
        %1486 = vmatprep.subr.bf16.mxu0 0
        %1487 = vmatpush2.bf16.msra.mxu0 0
        %1488 = vmatprep.subr.bf16.mxu0 0
        %1489 = vmatpush2.bf16.msra.mxu0 0
        %1490 = vmatprep.subr.bf16.mxu0 0
        %1491 = vmatpush2.bf16.msra.mxu0 0
        %1492 = vmatprep.subr.bf16.mxu0 0
        %1493 = vmatpush2.bf16.msra.mxu0 0
        %1494 = vmatprep.subr.bf16.mxu0 0
        %1495 = vmatpush2.bf16.msra.mxu0 0
        %1496 = vmatprep.mubr.bf16.mxu0 0
        %1497 = vmatmul.mubr.bf16.gmra.mxu0 %v972
        %v1498 = vpop.f32.mrf.mxu0
        %v1499 = vadd.f32 %v1450, %v1498
        %v1500 = vpop.f32.mrf.mxu0
        %v1501 = vpop.f32.mrf.mxu0
        %v1502 = vadd.f32 %v1450, %v1501
        %v1503 = vpop.f32.mrf.mxu0
        %1504 = vdwg.mxu0
        %s1505 = scalar_lea.vmem %s816, 16
        %v1506 = vld [vmem:[%s1505] sm:$0xf]
        %v1507 = vld [vmem:[%s1505 + $0x4] sm:$0xf]
        %v1508 = vld [vmem:[%s1505 + $0x8] sm:$0xf]
        %v1509 = vld [vmem:[%s1505 + $0xc] sm:$0xf]
        %s1510 = scalar_lea.vmem %s828, 1
        %v1511 = vld [vmem:[%s1510] sm:$0x1]
        %v1513 = vlaneseq
        %v1514 = vshrl.u32 %v1513, 7
        %v1515 = vsub.s32 0, %v1514
        %v1516 = vrot.slane %v1511, %v1515
        %v1522 = vunpack.c.l.b16 %v1506
        %v1523 = vunpack.c.l.b16 %v1507
        %v1524 = vunpack.c.l.b16 %v1508
        %v1525 = vunpack.c.l.b16 %v1509
        %v1526 = vpack.c.b16 %v1523, %v1522
        %v1527 = vpack.c.b16 %v1525, %v1524
        %1530 = vmatprep.subr.bf16.mxu0 0
        %1531 = vmatpush1.bf16.msra.mxu0 0
        %1532 = vmatprep.subr.bf16.mxu0 0
        %1533 = vmatpush1.bf16.msra.mxu0 0
        %1534 = vmatprep.subr.bf16.mxu0 0
        %1535 = vmatpush1.bf16.msra.mxu0 0
        %1536 = vmatprep.subr.bf16.mxu0 0
        %1537 = vmatpush1.bf16.msra.mxu0 0
        %1538 = vmatprep.subr.bf16.mxu0 0
        %1539 = vmatpush1.bf16.msra.mxu0 0
        %1540 = vmatprep.subr.bf16.mxu0 0
        %1541 = vmatpush1.bf16.msra.mxu0 0
        %1542 = vmatprep.subr.bf16.mxu0 0
        %1543 = vmatpush1.bf16.msra.mxu0 %v1527
        %1544 = vmatprep.subr.bf16.mxu0 0
        %1545 = vmatpush1.bf16.msra.mxu0 %v1526
        %1546 = vmatprep.subr.bf16.mxu0 0
        %1547 = vmatpush2.bf16.msra.mxu0 0
        %1548 = vmatprep.subr.bf16.mxu0 0
        %1549 = vmatpush2.bf16.msra.mxu0 0
        %1550 = vmatprep.subr.bf16.mxu0 0
        %1551 = vmatpush2.bf16.msra.mxu0 0
        %1552 = vmatprep.subr.bf16.mxu0 0
        %1553 = vmatpush2.bf16.msra.mxu0 0
        %1554 = vmatprep.subr.bf16.mxu0 0
        %1555 = vmatpush2.bf16.msra.mxu0 0
        %1556 = vmatprep.subr.bf16.mxu0 0
        %1557 = vmatpush2.bf16.msra.mxu0 0
        %1558 = vmatprep.subr.bf16.mxu0 0
        %1559 = vmatpush2.bf16.msra.mxu0 0
        %1560 = vmatprep.subr.bf16.mxu0 0
        %1561 = vmatpush2.bf16.msra.mxu0 0
        %1562 = vmatprep.mubr.bf16.mxu0 0
        %1563 = vmatmul.mubr.bf16.gmra.mxu0 %v972
        %v1564 = vpop.f32.mrf.mxu0
        %v1565 = vadd.f32 %v1516, %v1564
        %v1566 = vpop.f32.mrf.mxu0
        %v1567 = vpop.f32.mrf.mxu0
        %v1568 = vadd.f32 %v1516, %v1567
        %v1569 = vpop.f32.mrf.mxu0
        %1570 = vdwg.mxu0
        %v1571 = vpack.c.bf16 %v1433, %v1433
        %v1572 = vpack.c.bf16 %v1436, %v1436
        %v1573 = vpack.c.bf16 %v1499, %v1499
        %v1574 = vpack.c.bf16 %v1502, %v1502
        %v1576 = vsel %vm1157, %v1571, 0
        %v1579 = vsel %vm1157, %v1573, 0
        %1581 = vmatprep.subr.bf16.mxu0 0
        %1582 = vmatpush1.bf16.xpose.msra.mxu0 0
        %1583 = vmatprep.subr.bf16.mxu0 0
        %1584 = vmatpush1.bf16.xpose.msra.mxu0 0
        %1585 = vmatprep.subr.bf16.mxu0 0
        %1586 = vmatpush1.bf16.xpose.msra.mxu0 0
        %1587 = vmatprep.subr.bf16.mxu0 0
        %1588 = vmatpush1.bf16.xpose.msra.mxu0 0
        %1589 = vmatprep.subr.bf16.mxu0 0
        %1590 = vmatpush1.bf16.xpose.msra.mxu0 0
        %1591 = vmatprep.subr.bf16.mxu0 0
        %1592 = vmatpush1.bf16.xpose.msra.mxu0 0
        %1593 = vmatprep.subr.bf16.mxu0 0
        %1594 = vmatpush1.bf16.xpose.msra.mxu0 0
        %1595 = vmatprep.subr.bf16.mxu0 0
        %1596 = vmatpush1.bf16.xpose.msra.mxu0 %v1579
        %1597 = vmatprep.subr.bf16.mxu0 0
        %1598 = vmatpush2.bf16.xpose.msra.mxu0 0
        %1599 = vmatprep.subr.bf16.mxu0 0
        %1600 = vmatpush2.bf16.xpose.msra.mxu0 0
        %1601 = vmatprep.subr.bf16.mxu0 0
        %1602 = vmatpush2.bf16.xpose.msra.mxu0 0
        %1603 = vmatprep.subr.bf16.mxu0 0
        %1604 = vmatpush2.bf16.xpose.msra.mxu0 0
        %1605 = vmatprep.subr.bf16.mxu0 0
        %1606 = vmatpush2.bf16.xpose.msra.mxu0 0
        %1607 = vmatprep.subr.bf16.mxu0 0
        %1608 = vmatpush2.bf16.xpose.msra.mxu0 0
        %1609 = vmatprep.subr.bf16.mxu0 0
        %1610 = vmatpush2.bf16.xpose.msra.mxu0 0
        %1611 = vmatprep.subr.bf16.mxu0 0
        %1612 = vmatpush2.bf16.xpose.msra.mxu0 0
        %1613 = vmatprep.mubr.bf16.mxu0 0
        %1614 = vmatmul.mubr.bf16.gmra.mxu0 %v1576
        %v1615 = vpop.f32.mrf.mxu0
        %v1616 = vadd.f32 %v1150, %v1615
        %v1617 = vpop.f32.mrf.mxu0
        %v1618 = vpop.f32.mrf.mxu0
        %v1619 = vpop.f32.mrf.mxu0
        %1620 = vdwg.mxu0
        %v1622 = vsel %vm1157, %v1572, 0
        %v1625 = vsel %vm1157, %v1574, 0
        %1627 = vmatprep.subr.bf16.mxu0 0
        %1628 = vmatpush1.bf16.xpose.msra.mxu0 0
        %1629 = vmatprep.subr.bf16.mxu0 0
        %1630 = vmatpush1.bf16.xpose.msra.mxu0 0
        %1631 = vmatprep.subr.bf16.mxu0 0
        %1632 = vmatpush1.bf16.xpose.msra.mxu0 0
        %1633 = vmatprep.subr.bf16.mxu0 0
        %1634 = vmatpush1.bf16.xpose.msra.mxu0 0
        %1635 = vmatprep.subr.bf16.mxu0 0
        %1636 = vmatpush1.bf16.xpose.msra.mxu0 0
        %1637 = vmatprep.subr.bf16.mxu0 0
        %1638 = vmatpush1.bf16.xpose.msra.mxu0 0
        %1639 = vmatprep.subr.bf16.mxu0 0
        %1640 = vmatpush1.bf16.xpose.msra.mxu0 0
        %1641 = vmatprep.subr.bf16.mxu0 0
        %1642 = vmatpush1.bf16.xpose.msra.mxu0 %v1625
        %1643 = vmatprep.subr.bf16.mxu0 0
        %1644 = vmatpush2.bf16.xpose.msra.mxu0 0
        %1645 = vmatprep.subr.bf16.mxu0 0
        %1646 = vmatpush2.bf16.xpose.msra.mxu0 0
        %1647 = vmatprep.subr.bf16.mxu0 0
        %1648 = vmatpush2.bf16.xpose.msra.mxu0 0
        %1649 = vmatprep.subr.bf16.mxu0 0
        %1650 = vmatpush2.bf16.xpose.msra.mxu0 0
        %1651 = vmatprep.subr.bf16.mxu0 0
        %1652 = vmatpush2.bf16.xpose.msra.mxu0 0
        %1653 = vmatprep.subr.bf16.mxu0 0
        %1654 = vmatpush2.bf16.xpose.msra.mxu0 0
        %1655 = vmatprep.subr.bf16.mxu0 0
        %1656 = vmatpush2.bf16.xpose.msra.mxu0 0
        %1657 = vmatprep.subr.bf16.mxu0 0
        %1658 = vmatpush2.bf16.xpose.msra.mxu0 0
        %1659 = vmatprep.mubr.bf16.mxu0 0
        %1660 = vmatmul.mubr.bf16.gmra.mxu0 %v1622
        %v1661 = vpop.f32.mrf.mxu0
        %v1662 = vadd.f32 %v1154, %v1661
        %v1663 = vpop.f32.mrf.mxu0
        %v1664 = vpop.f32.mrf.mxu0
        %v1665 = vpop.f32.mrf.mxu0
        %1666 = vdwg.mxu0
        %v1667 = vsel %vm1250, %v1616, -inf
        %1668 = vmax.xlane.f32.xlu0 %v1667
        %v1669 = vpop.xlane.xlu0 %1668
        %v1670 = vsel %vm1250, %v1662, -inf
        %1671 = vmax.xlane.f32.xlu0 %v1670
        %v1672 = vpop.xlane.xlu0 %1671
        %v1673 = vsub.f32 %v1616, %v1669
        %v1674 = vsub.f32 %v1662, %v1672
        %v1675 = vmul.f32 %v1673, 1.442695
        %v1676 = vpow.pop %v1675
        %v1677 = vmul.f32 %v1674, 1.442695
        %v1678 = vpow.pop %v1677
        %v1679 = vsel %vm1250, %v1676, 0.0
        %1680 = vadd.xlane.f32.xlu0 %v1679
        %v1681 = vpop.xlane.xlu0 %1680
        %v1682 = vsel %vm1250, %v1678, 0.0
        %1683 = vadd.xlane.f32.xlu0 %v1682
        %v1684 = vpop.xlane.xlu0 %1683
        %v1685 = vrcp.pop %v1681
        %v1686 = vmul.f32 %v1676, %v1685
        %v1687 = vrcp.pop %v1684
        %v1688 = vmul.f32 %v1678, %v1687
        %v1689 = vpack.c.bf16 %v1686, %v1686
        %v1690 = vpack.c.bf16 %v1688, %v1688
        %v1691 = vpack.c.bf16 %v1565, %v1565
        %v1692 = vpack.c.bf16 %v1568, %v1568
        %v1694 = vsel %vm1250, %v1689, 0
        %v1697 = vsel %vm1280, %v1691, 0
        %1699 = vmatprep.subr.bf16.mxu0 0
        %1700 = vmatpush1.bf16.msra.mxu0 0
        %1701 = vmatprep.subr.bf16.mxu0 0
        %1702 = vmatpush1.bf16.msra.mxu0 0
        %1703 = vmatprep.subr.bf16.mxu0 0
        %1704 = vmatpush1.bf16.msra.mxu0 0
        %1705 = vmatprep.subr.bf16.mxu0 0
        %1706 = vmatpush1.bf16.msra.mxu0 0
        %1707 = vmatprep.subr.bf16.mxu0 0
        %1708 = vmatpush1.bf16.msra.mxu0 0
        %1709 = vmatprep.subr.bf16.mxu0 0
        %1710 = vmatpush1.bf16.msra.mxu0 0
        %1711 = vmatprep.subr.bf16.mxu0 0
        %1712 = vmatpush1.bf16.msra.mxu0 0
        %1713 = vmatprep.subr.bf16.mxu0 0
        %1714 = vmatpush1.bf16.msra.mxu0 %v1697
        %1715 = vmatprep.subr.bf16.mxu0 0
        %1716 = vmatpush2.bf16.msra.mxu0 0
        %1717 = vmatprep.subr.bf16.mxu0 0
        %1718 = vmatpush2.bf16.msra.mxu0 0
        %1719 = vmatprep.subr.bf16.mxu0 0
        %1720 = vmatpush2.bf16.msra.mxu0 0
        %1721 = vmatprep.subr.bf16.mxu0 0
        %1722 = vmatpush2.bf16.msra.mxu0 0
        %1723 = vmatprep.subr.bf16.mxu0 0
        %1724 = vmatpush2.bf16.msra.mxu0 0
        %1725 = vmatprep.subr.bf16.mxu0 0
        %1726 = vmatpush2.bf16.msra.mxu0 0
        %1727 = vmatprep.subr.bf16.mxu0 0
        %1728 = vmatpush2.bf16.msra.mxu0 0
        %1729 = vmatprep.subr.bf16.mxu0 0
        %1730 = vmatpush2.bf16.msra.mxu0 0
        %1731 = vmatprep.mubr.bf16.mxu0 0
        %1732 = vmatmul.mubr.bf16.gmra.mxu0 %v1694
        %v1733 = vpop.f32.mrf.mxu0
        %v1734 = vadd.f32 0.0, %v1733
        %v1735 = vpop.f32.mrf.mxu0
        %v1736 = vpop.f32.mrf.mxu0
        %v1737 = vpop.f32.mrf.mxu0
        %1738 = vdwg.mxu0
        %v1740 = vsel %vm1250, %v1690, 0
        %v1743 = vsel %vm1280, %v1692, 0
        %1745 = vmatprep.subr.bf16.mxu0 0
        %1746 = vmatpush1.bf16.msra.mxu0 0
        %1747 = vmatprep.subr.bf16.mxu0 0
        %1748 = vmatpush1.bf16.msra.mxu0 0
        %1749 = vmatprep.subr.bf16.mxu0 0
        %1750 = vmatpush1.bf16.msra.mxu0 0
        %1751 = vmatprep.subr.bf16.mxu0 0
        %1752 = vmatpush1.bf16.msra.mxu0 0
        %1753 = vmatprep.subr.bf16.mxu0 0
        %1754 = vmatpush1.bf16.msra.mxu0 0
        %1755 = vmatprep.subr.bf16.mxu0 0
        %1756 = vmatpush1.bf16.msra.mxu0 0
        %1757 = vmatprep.subr.bf16.mxu0 0
        %1758 = vmatpush1.bf16.msra.mxu0 0
        %1759 = vmatprep.subr.bf16.mxu0 0
        %1760 = vmatpush1.bf16.msra.mxu0 %v1743
        %1761 = vmatprep.subr.bf16.mxu0 0
        %1762 = vmatpush2.bf16.msra.mxu0 0
        %1763 = vmatprep.subr.bf16.mxu0 0
        %1764 = vmatpush2.bf16.msra.mxu0 0
        %1765 = vmatprep.subr.bf16.mxu0 0
        %1766 = vmatpush2.bf16.msra.mxu0 0
        %1767 = vmatprep.subr.bf16.mxu0 0
        %1768 = vmatpush2.bf16.msra.mxu0 0
        %1769 = vmatprep.subr.bf16.mxu0 0
        %1770 = vmatpush2.bf16.msra.mxu0 0
        %1771 = vmatprep.subr.bf16.mxu0 0
        %1772 = vmatpush2.bf16.msra.mxu0 0
        %1773 = vmatprep.subr.bf16.mxu0 0
        %1774 = vmatpush2.bf16.msra.mxu0 0
        %1775 = vmatprep.subr.bf16.mxu0 0
        %1776 = vmatpush2.bf16.msra.mxu0 0
        %1777 = vmatprep.mubr.bf16.mxu0 0
        %1778 = vmatmul.mubr.bf16.gmra.mxu0 %v1740
        %v1779 = vpop.f32.mrf.mxu0
        %v1780 = vadd.f32 0.0, %v1779
        %v1781 = vpop.f32.mrf.mxu0
        %v1782 = vpop.f32.mrf.mxu0
        %v1783 = vpop.f32.mrf.mxu0
        %1784 = vdwg.mxu0
        %v1785 = vpack.c.bf16 %v1780, %v1734
        %s1786 = scalar_lea.vmem %s833, 8
        %v1787 = vld [vmem:[%s1786] sm:$0xf]
        %v1788 = vld [vmem:[%s1786 + $0x4] sm:$0xf]
        %v1791 = vunpack.c.l.b16 %v1787
        %v1792 = vunpack.c.l.b16 %v1788
        %v1793 = vpack.c.b16 %v1792, %v1791
        %v1796 = vsel %vm1157, %v1785, 0
        %1798 = vmatprep.subr.bf16.mxu0 0
        %1799 = vmatpush1.bf16.msra.mxu0 0
        %1800 = vmatprep.subr.bf16.mxu0 0
        %1801 = vmatpush1.bf16.msra.mxu0 0
        %1802 = vmatprep.subr.bf16.mxu0 0
        %1803 = vmatpush1.bf16.msra.mxu0 0
        %1804 = vmatprep.subr.bf16.mxu0 0
        %1805 = vmatpush1.bf16.msra.mxu0 0
        %1806 = vmatprep.subr.bf16.mxu0 0
        %1807 = vmatpush1.bf16.msra.mxu0 0
        %1808 = vmatprep.subr.bf16.mxu0 0
        %1809 = vmatpush1.bf16.msra.mxu0 0
        %1810 = vmatprep.subr.bf16.mxu0 0
        %1811 = vmatpush1.bf16.msra.mxu0 0
        %1812 = vmatprep.subr.bf16.mxu0 0
        %1813 = vmatpush1.bf16.msra.mxu0 %v1793
        %1814 = vmatprep.subr.bf16.mxu0 0
        %1815 = vmatpush2.bf16.msra.mxu0 0
        %1816 = vmatprep.subr.bf16.mxu0 0
        %1817 = vmatpush2.bf16.msra.mxu0 0
        %1818 = vmatprep.subr.bf16.mxu0 0
        %1819 = vmatpush2.bf16.msra.mxu0 0
        %1820 = vmatprep.subr.bf16.mxu0 0
        %1821 = vmatpush2.bf16.msra.mxu0 0
        %1822 = vmatprep.subr.bf16.mxu0 0
        %1823 = vmatpush2.bf16.msra.mxu0 0
        %1824 = vmatprep.subr.bf16.mxu0 0
        %1825 = vmatpush2.bf16.msra.mxu0 0
        %1826 = vmatprep.subr.bf16.mxu0 0
        %1827 = vmatpush2.bf16.msra.mxu0 0
        %1828 = vmatprep.subr.bf16.mxu0 0
        %1829 = vmatpush2.bf16.msra.mxu0 0
        %1830 = vmatprep.mubr.bf16.mxu0 0
        %1831 = vmatmul.mubr.bf16.gmra.mxu0 %v1796
        %v1832 = vpop.f32.mrf.mxu0
        %v1833 = vadd.f32 0.0, %v1832
        %v1834 = vpop.f32.mrf.mxu0
        %v1835 = vpop.f32.mrf.mxu0
        %v1836 = vadd.f32 0.0, %v1835
        %v1837 = vpop.f32.mrf.mxu0
        %1838 = vdwg.mxu0
        %v1841 = vunpack.c.l.b16 %v1371
        %v1842 = vunpack.c.l.b16 %v1372
        %v1843 = vpack.c.b16 %v1842, %v1841
        %v1846 = vsel %vm1157, %v1370, 0
        %1848 = vmatprep.subr.bf16.mxu0 0
        %1849 = vmatpush1.bf16.msra.mxu0 0
        %1850 = vmatprep.subr.bf16.mxu0 0
        %1851 = vmatpush1.bf16.msra.mxu0 0
        %1852 = vmatprep.subr.bf16.mxu0 0
        %1853 = vmatpush1.bf16.msra.mxu0 0
        %1854 = vmatprep.subr.bf16.mxu0 0
        %1855 = vmatpush1.bf16.msra.mxu0 0
        %1856 = vmatprep.subr.bf16.mxu0 0
        %1857 = vmatpush1.bf16.msra.mxu0 0
        %1858 = vmatprep.subr.bf16.mxu0 0
        %1859 = vmatpush1.bf16.msra.mxu0 0
        %1860 = vmatprep.subr.bf16.mxu0 0
        %1861 = vmatpush1.bf16.msra.mxu0 0
        %1862 = vmatprep.subr.bf16.mxu0 0
        %1863 = vmatpush1.bf16.msra.mxu0 %v1843
        %1864 = vmatprep.subr.bf16.mxu0 0
        %1865 = vmatpush2.bf16.msra.mxu0 0
        %1866 = vmatprep.subr.bf16.mxu0 0
        %1867 = vmatpush2.bf16.msra.mxu0 0
        %1868 = vmatprep.subr.bf16.mxu0 0
        %1869 = vmatpush2.bf16.msra.mxu0 0
        %1870 = vmatprep.subr.bf16.mxu0 0
        %1871 = vmatpush2.bf16.msra.mxu0 0
        %1872 = vmatprep.subr.bf16.mxu0 0
        %1873 = vmatpush2.bf16.msra.mxu0 0
        %1874 = vmatprep.subr.bf16.mxu0 0
        %1875 = vmatpush2.bf16.msra.mxu0 0
        %1876 = vmatprep.subr.bf16.mxu0 0
        %1877 = vmatpush2.bf16.msra.mxu0 0
        %1878 = vmatprep.subr.bf16.mxu0 0
        %1879 = vmatpush2.bf16.msra.mxu0 0
        %1880 = vmatprep.mubr.bf16.mxu0 0
        %1881 = vmatmul.mubr.bf16.gmra.mxu0 %v1846
        %v1882 = vpop.f32.mrf.mxu0
        %v1883 = vadd.f32 %v1833, %v1882
        %v1884 = vpop.f32.mrf.mxu0
        %v1885 = vpop.f32.mrf.mxu0
        %v1886 = vadd.f32 %v1836, %v1885
        %v1887 = vpop.f32.mrf.mxu0
        %1888 = vdwg.mxu0
        %v1889 = vld [vmem:[%s836] sm:$0x1]
        %v1891 = vlaneseq
        %v1892 = vshrl.u32 %v1891, 7
        %v1893 = vsub.s32 0, %v1892
        %v1894 = vrot.slane %v1889, %v1893
        %v1896 = vadd.f32 %v1883, %v1894
        %v1897 = vadd.f32 %v1886, %v1894
        %v1898 = vadd.f32 %v920, %v1896
        %v1899 = vadd.f32 %v921, %v1897
        %v1900 = vld [vmem:[%s839] sm:$0x1]
        %v1901 = vld [vmem:[%s842] sm:$0x1]
        %v1902 = vsel %vm970, %v1898, 0.0
        %1903 = vadd.xlane.f32.xlu0 %v1902
        %v1904 = vpop.xlane.xlu0 %1903
        %v1905 = vsel %vm970, %v1899, 0.0
        %1906 = vadd.xlane.f32.xlu0 %v1905
        %v1907 = vpop.xlane.xlu0 %1906
        %v1908 = vrcp.pop 32.0
        %v1909 = vmul.f32 %v1904, %v1908
        %v1910 = vmul.f32 %v1907, %v1908
        %v1911 = vsub.f32 %v1898, %v1909
        %v1912 = vsub.f32 %v1899, %v1910
        %v1913 = vmul.f32 %v1911, %v1911
        %v1914 = vmul.f32 %v1912, %v1912
        %v1915 = vsel %vm970, %v1913, 0.0
        %1916 = vadd.xlane.f32.xlu0 %v1915
        %v1917 = vpop.xlane.xlu0 %1916
        %v1918 = vsel %vm970, %v1914, 0.0
        %1919 = vadd.xlane.f32.xlu0 %v1918
        %v1920 = vpop.xlane.xlu0 %1919
        %v1921 = vmul.f32 %v1917, %v1908
        %v1922 = vmul.f32 %v1920, %v1908
        %v1923 = vadd.f32 %v1921, 1e-12
        %v1924 = vadd.f32 %v1922, 1e-12
        %v1925 = vrsqrt.pop %v1923
        %v1926 = vrsqrt.pop %v1924
        %v1927 = vmul.f32 %v1911, %v1925
        %v1928 = vmul.f32 %v1912, %v1926
        %v1930 = vlaneseq
        %v1931 = vshrl.u32 %v1930, 7
        %v1932 = vsub.s32 0, %v1931
        %v1933 = vrot.slane %v1900, %v1932
        %v1935 = vmul.f32 %v1927, %v1933
        %v1936 = vmul.f32 %v1928, %v1933
        %v1938 = vlaneseq
        %v1939 = vshrl.u32 %v1938, 7
        %v1940 = vsub.s32 0, %v1939
        %v1941 = vrot.slane %v1901, %v1940
        %v1943 = vadd.f32 %v1935, %v1941
        %v1944 = vadd.f32 %v1936, %v1941
        %v1945 = vpack.c.bf16 %v1944, %v1943
        %v1946 = vld [vmem:[%s847] sm:$0xf]
        %v1947 = vld [vmem:[%s847 + $0x4] sm:$0xf]
        %v1948 = vld [vmem:[%s847 + $0x8] sm:$0xf]
        %v1949 = vld [vmem:[%s847 + $0xc] sm:$0xf]
        %v1950 = vld [vmem:[%s850] sm:$0x1]
        %v1952 = vlaneseq
        %v1953 = vshrl.u32 %v1952, 7
        %v1954 = vsub.s32 0, %v1953
        %v1955 = vrot.slane %v1950, %v1954
        %v1961 = vunpack.c.l.b16 %v1946
        %v1962 = vunpack.c.l.b16 %v1947
        %v1963 = vunpack.c.l.b16 %v1948
        %v1964 = vunpack.c.l.b16 %v1949
        %v1965 = vpack.c.b16 %v1962, %v1961
        %v1966 = vpack.c.b16 %v1964, %v1963
        %v1970 = vsel %vm970, %v1945, 0
        %1972 = vmatprep.subr.bf16.mxu0 0
        %1973 = vmatpush1.bf16.msra.mxu0 0
        %1974 = vmatprep.subr.bf16.mxu0 0
        %1975 = vmatpush1.bf16.msra.mxu0 0
        %1976 = vmatprep.subr.bf16.mxu0 0
        %1977 = vmatpush1.bf16.msra.mxu0 0
        %1978 = vmatprep.subr.bf16.mxu0 0
        %1979 = vmatpush1.bf16.msra.mxu0 0
        %1980 = vmatprep.subr.bf16.mxu0 0
        %1981 = vmatpush1.bf16.msra.mxu0 0
        %1982 = vmatprep.subr.bf16.mxu0 0
        %1983 = vmatpush1.bf16.msra.mxu0 0
        %1984 = vmatprep.subr.bf16.mxu0 0
        %1985 = vmatpush1.bf16.msra.mxu0 %v1966
        %1986 = vmatprep.subr.bf16.mxu0 0
        %1987 = vmatpush1.bf16.msra.mxu0 %v1965
        %1988 = vmatprep.subr.bf16.mxu0 0
        %1989 = vmatpush2.bf16.msra.mxu0 0
        %1990 = vmatprep.subr.bf16.mxu0 0
        %1991 = vmatpush2.bf16.msra.mxu0 0
        %1992 = vmatprep.subr.bf16.mxu0 0
        %1993 = vmatpush2.bf16.msra.mxu0 0
        %1994 = vmatprep.subr.bf16.mxu0 0
        %1995 = vmatpush2.bf16.msra.mxu0 0
        %1996 = vmatprep.subr.bf16.mxu0 0
        %1997 = vmatpush2.bf16.msra.mxu0 0
        %1998 = vmatprep.subr.bf16.mxu0 0
        %1999 = vmatpush2.bf16.msra.mxu0 0
        %2000 = vmatprep.subr.bf16.mxu0 0
        %2001 = vmatpush2.bf16.msra.mxu0 0
        %2002 = vmatprep.subr.bf16.mxu0 0
        %2003 = vmatpush2.bf16.msra.mxu0 0
        %2004 = vmatprep.mubr.bf16.mxu0 0
        %2005 = vmatmul.mubr.bf16.gmra.mxu0 %v1970
        %v2006 = vpop.f32.mrf.mxu0
        %v2007 = vadd.f32 %v1955, %v2006
        %v2008 = vpop.f32.mrf.mxu0
        %v2009 = vpop.f32.mrf.mxu0
        %v2010 = vadd.f32 %v1955, %v2009
        %v2011 = vpop.f32.mrf.mxu0
        %2012 = vdwg.mxu0
        %v2013 = vmul.f32 %v2007, %v2007
        %v2014 = vmul.f32 %v2010, %v2010
        %v2015 = vmul.f32 %v2007, %v2013
        %v2016 = vmul.f32 %v2010, %v2014
        %v2017 = vmul.f32 %v2015, 0.044715
        %v2018 = vmul.f32 %v2016, 0.044715
        %v2019 = vadd.f32 %v2007, %v2017
        %v2020 = vadd.f32 %v2010, %v2018
        %v2021 = vmul.f32 %v2019, 0.7978846
        %v2022 = vmul.f32 %v2020, 0.7978846
        %v2023 = vtanh.pop %v2021
        %v2024 = vtanh.pop %v2022
        %v2025 = vadd.f32 %v2023, 1.0
        %v2026 = vadd.f32 %v2024, 1.0
        %v2027 = vmul.f32 %v2025, 0.5
        %v2028 = vmul.f32 %v2026, 0.5
        %v2029 = vmul.f32 %v2007, %v2027
        %v2030 = vmul.f32 %v2010, %v2028
        %v2031 = vpack.c.bf16 %v2030, %v2029
        %v2032 = vld [vmem:[%s855] sm:$0xf]
        %v2033 = vld [vmem:[%s855 + $0x4] sm:$0xf]
        %v2034 = vld [vmem:[%s855 + $0x8] sm:$0xf]
        %v2035 = vld [vmem:[%s855 + $0xc] sm:$0xf]
        %v2036 = vld [vmem:[%s855 + $0x10] sm:$0xf]
        %v2037 = vld [vmem:[%s855 + $0x14] sm:$0xf]
        %v2038 = vld [vmem:[%s855 + $0x18] sm:$0xf]
        %v2039 = vld [vmem:[%s855 + $0x1c] sm:$0xf]
        %v2040 = vld [vmem:[%s858] sm:$0x1]
        %v2042 = vlaneseq
        %v2043 = vshrl.u32 %v2042, 7
        %v2044 = vsub.s32 0, %v2043
        %v2045 = vrot.slane %v2040, %v2044
        %v2055 = vunpack.c.l.b16 %v2032
        %v2056 = vunpack.c.l.b16 %v2033
        %v2057 = vunpack.c.l.b16 %v2034
        %v2058 = vunpack.c.l.b16 %v2035
        %v2059 = vunpack.c.l.b16 %v2036
        %v2060 = vunpack.c.l.b16 %v2037
        %v2061 = vunpack.c.l.b16 %v2038
        %v2062 = vunpack.c.l.b16 %v2039
        %v2063 = vpack.c.b16 %v2056, %v2055
        %v2064 = vpack.c.b16 %v2058, %v2057
        %v2065 = vpack.c.b16 %v2060, %v2059
        %v2066 = vpack.c.b16 %v2062, %v2061
        %vm2071 = vcmask 523264
        %v2073 = vsel %vm2071, %v2031, 0
        %2075 = vmatprep.subr.bf16.mxu0 0
        %2076 = vmatpush1.bf16.msra.mxu0 0
        %2077 = vmatprep.subr.bf16.mxu0 0
        %2078 = vmatpush1.bf16.msra.mxu0 0
        %2079 = vmatprep.subr.bf16.mxu0 0
        %2080 = vmatpush1.bf16.msra.mxu0 0
        %2081 = vmatprep.subr.bf16.mxu0 0
        %2082 = vmatpush1.bf16.msra.mxu0 0
        %2083 = vmatprep.subr.bf16.mxu0 0
        %2084 = vmatpush1.bf16.msra.mxu0 %v2066
        %2085 = vmatprep.subr.bf16.mxu0 0
        %2086 = vmatpush1.bf16.msra.mxu0 %v2065
        %2087 = vmatprep.subr.bf16.mxu0 0
        %2088 = vmatpush1.bf16.msra.mxu0 %v2064
        %2089 = vmatprep.subr.bf16.mxu0 0
        %2090 = vmatpush1.bf16.msra.mxu0 %v2063
        %2091 = vmatprep.subr.bf16.mxu0 0
        %2092 = vmatpush2.bf16.msra.mxu0 0
        %2093 = vmatprep.subr.bf16.mxu0 0
        %2094 = vmatpush2.bf16.msra.mxu0 0
        %2095 = vmatprep.subr.bf16.mxu0 0
        %2096 = vmatpush2.bf16.msra.mxu0 0
        %2097 = vmatprep.subr.bf16.mxu0 0
        %2098 = vmatpush2.bf16.msra.mxu0 0
        %2099 = vmatprep.subr.bf16.mxu0 0
        %2100 = vmatpush2.bf16.msra.mxu0 0
        %2101 = vmatprep.subr.bf16.mxu0 0
        %2102 = vmatpush2.bf16.msra.mxu0 0
        %2103 = vmatprep.subr.bf16.mxu0 0
        %2104 = vmatpush2.bf16.msra.mxu0 0
        %2105 = vmatprep.subr.bf16.mxu0 0
        %2106 = vmatpush2.bf16.msra.mxu0 0
        %2107 = vmatprep.mubr.bf16.mxu0 0
        %2108 = vmatmul.mubr.bf16.gmra.mxu0 %v2073
        %v2109 = vpop.f32.mrf.mxu0
        %v2110 = vadd.f32 %v2045, %v2109
        %v2111 = vpop.f32.mrf.mxu0
        %v2112 = vpop.f32.mrf.mxu0
        %v2113 = vadd.f32 %v2045, %v2112
        %v2114 = vpop.f32.mrf.mxu0
        %2115 = vdwg.mxu0
        %v2116 = vadd.f32 %v1943, %v2110
        %v2117 = vadd.f32 %v1944, %v2113
        %v2118 = vld [vmem:[%s861] sm:$0x1]
        %v2119 = vld [vmem:[%s864] sm:$0x1]
        %v2120 = vsel %vm970, %v2116, 0.0
        %2121 = vadd.xlane.f32.xlu0 %v2120
        %v2122 = vpop.xlane.xlu0 %2121
        %v2123 = vsel %vm970, %v2117, 0.0
        %2124 = vadd.xlane.f32.xlu0 %v2123
        %v2125 = vpop.xlane.xlu0 %2124
        %v2126 = vmul.f32 %v2122, %v1908
        %v2127 = vmul.f32 %v2125, %v1908
        %v2128 = vsub.f32 %v2116, %v2126
        %v2129 = vsub.f32 %v2117, %v2127
        %v2130 = vmul.f32 %v2128, %v2128
        %v2131 = vmul.f32 %v2129, %v2129
        %v2132 = vsel %vm970, %v2130, 0.0
        %2133 = vadd.xlane.f32.xlu0 %v2132
        %v2134 = vpop.xlane.xlu0 %2133
        %v2135 = vsel %vm970, %v2131, 0.0
        %2136 = vadd.xlane.f32.xlu0 %v2135
        %v2137 = vpop.xlane.xlu0 %2136
        %v2138 = vmul.f32 %v2134, %v1908
        %v2139 = vmul.f32 %v2137, %v1908
        %v2140 = vadd.f32 %v2138, 1e-12
        %v2141 = vadd.f32 %v2139, 1e-12
        %v2142 = vrsqrt.pop %v2140
        %v2143 = vrsqrt.pop %v2141
        %v2144 = vmul.f32 %v2128, %v2142
        %v2145 = vmul.f32 %v2129, %v2143
        %v2147 = vlaneseq
        %v2148 = vshrl.u32 %v2147, 7
        %v2149 = vsub.s32 0, %v2148
        %v2150 = vrot.slane %v2118, %v2149
        %v2152 = vmul.f32 %v2144, %v2150
        %v2153 = vmul.f32 %v2145, %v2150
        %v2155 = vlaneseq
        %v2156 = vshrl.u32 %v2155, 7
        %v2157 = vsub.s32 0, %v2156
        %v2158 = vrot.slane %v2119, %v2157
        %v2160 = vadd.f32 %v2152, %v2158
        %v2161 = vadd.f32 %v2153, %v2158
        %2162 = vst.msk [vmem:[#allocation2] sm:$0xff] %vm970, %v2160
        %2163 = vst.msk [vmem:[#allocation2 + $0x8] sm:$0xff] %vm970, %v2161
        %p2164 = scmp.eq.s32.totalorder %s32, 1
        // Predicated region
        $region105: #{bio_clinical_bert_ft_forward.1} parent=99 // pred_check
          %p2165 = pneg %p2164
        $region106: #{bio_clinical_bert_ft_forward.1} parent=99 // pred_check_branch
          %2167 = sbr.rel (%p2165) target = $region108
        $region107: #{bio_clinical_bert_ft_forward.1} parent=99 // pred_region
          %v2170 = vrot.slane %v2161, 7
          %vm2171 = vcmask 1041409
          %v2172 = vsel %vm2171, %v2170, %v2160
          %vm2174 = vcmask 254976
          %2175 = vst.msk [vmem:[#allocation3] sm:$0x3] %vm2174, %v2172
        $region108: #{bio_clinical_bert_ft_forward.1} parent=99 // pred_fallthru
          _
        // Predicated region
        $region109: #{bio_clinical_bert_ft_forward.1} parent=99 // pred_check
          %p2176 = pneg %p545
        $region110: #{bio_clinical_bert_ft_forward.1} parent=99 // pred_check_branch
          %2178 = sbr.rel (%p2176) target = $region112
        $region111: #{bio_clinical_bert_ft_forward.1} parent=99 // pred_region
          %s2180 = ssub.s32 32, 32
          %2181 = vsyncadd [#allocation4], %s2180
          %s2183 = sshll.u32 [#allocation3], 4
          %s2184 = int_to_ptr.vmem [resolvable:$true] %s2183
          %2186 = dma.vmem_to_hbm [thread:$0]  %s2184, 32, %s20, [#allocation4]
        $region112: #{bio_clinical_bert_ft_forward.1} parent=99 // pred_fallthru
          _
        // Predicated region
        $region113: #{bio_clinical_bert_ft_forward.1} parent=99 // pred_check
          %p2187 = pneg %p545
        $region114: #{bio_clinical_bert_ft_forward.1} parent=99 // pred_check_branch
          %2189 = sbr.rel (%p2187) target = $region116
        $region115: #{bio_clinical_bert_ft_forward.1} parent=99 // pred_region
          %2190 = dma.done [#allocation4], 32
        $region116: #{bio_clinical_bert_ft_forward.1} parent=99 // pred_fallthru
          _
      $region100: #{bio_clinical_bert_ft_forward.1} parent=5 // pred_fallthru
        _
      %p2191 = scmp.le.s32.totalorder 2, %s27
      // Predicated region
      $region117: #{bio_clinical_bert_ft_forward.1} parent=5 // pred_check
        %p2192 = pneg %p2191
      $region118: #{bio_clinical_bert_ft_forward.1} parent=5 // pred_check_branch
        %2194 = sbr.rel (%p2192) target = $region120
      $region119: #{bio_clinical_bert_ft_forward.1} parent=5 // pred_region
        %s2195 = ssub.s32 %s27, 2
      $region120: #{bio_clinical_bert_ft_forward.1} parent=5 // pred_fallthru
        _
    $region6: #{bio_clinical_bert_ft_forward.1} parent=1 // loop_footer
      %s31 = sadd.s32 1, %s27
    $region7: #{bio_clinical_bert_ft_forward.1} parent=1 // loop_footer_branch
      %26 = sbr.rel target = $region3
    $region8: #{bio_clinical_bert_ft_forward.1} parent=1 // loop_exit
      _
    %2196 = vsyncpa [#allocation4], 1
    %s2197 = scalar_lea.sflag [#allocation4], 1
    %2198 = vsyncpa %s2197, 1

</llo_original>
